<compile_context>
chip_gen: v6e
topology: v6e:2x2x1
jax: 0.10.0
libtpu: 0.0.40
codegen_flags: <defaults>
</compile_context>

<pallas_src>
from math import sqrt

import jax
import jax.numpy as jnp
from jax.experimental import pallas as pl
from jax.experimental.pallas import tpu as pltpu


# --------------------------- Fused forward kernel ----------------------------
def ae_lstm_fused_kernel(ids_ref, embed_ref, wih_ref, whh_ref, b_ref,
                         whT_ref, wh_row_ref, wpx_ref, fcwT_ref, fcb_ref,
                         out_ref):
    # ids_ref   : [B, T]   int32 token ids (SMEM)
    # embed_ref : [V, E]   f32 embedding table (VMEM, tiny)
    # wih_ref   : [E, 4H]  bf16  W_ih^T (PyTorch gate order i,f,g,o)
    # whh_ref   : [H, 4H]  bf16  W_hh^T
    # b_ref     : [1, 4H]  f32   b_ih + b_hh
    # whT_ref   : [H, H]   bf16  Wh^T
    # wh_row_ref: [1, H]   f32   w[:H]
    # wpx_ref   : [2H, H]  bf16  concat([Wp, Wx], axis=0)
    # fcwT_ref  : [H, C]   bf16  fc weight^T
    # fcb_ref   : [1, C]   f32   fc bias
    # out_ref   : [B, C]   f32
    B, T = ids_ref.shape
    H = whh_ref.shape[0]
    bf16 = jnp.bfloat16

    # ---------------- In-kernel embedding gather (time-major) ----------------
    # 16 unrolled dynamic sublane-slice reads; everything stays in vregs.
    rows = []
    for t in range(T):
        for b in range(B):
            idx = ids_ref[b, t]                          # SMEM scalar read
            rows.append(embed_ref[pl.ds(idx, 1), :])     # [1, E]
    x_tm = jnp.concatenate(rows, axis=0)                 # [T*B, E] f32

    # ------------- Hoisted input projection (one MXU pass) -------------------
    xg = (jnp.dot(x_tm.astype(bf16), wih_ref[...],
                  preferred_element_type=jnp.float32)
          + b_ref[...])                                  # [T*B, 4H] f32

    whh = whh_ref[...]                                   # bf16 [H, 4H]
    whT = whT_ref[...]                                   # bf16 [H, H]
    wh_b = jnp.broadcast_to(wh_row_ref[...], (B, H))     # hoisted broadcast

    # One-tanh gate trick: sigmoid(z) == 0.5*(tanh(0.5*z) + 1).
    # Pre-scale the i/f/o gate columns by 0.5 so a single tanh over the whole
    # [B, 4H] gate vector covers both the sigmoids and the g-gate tanh.
    gate_scale = jnp.concatenate(
        [jnp.full((1, H), 0.5, jnp.float32),
         jnp.full((1, H), 0.5, jnp.float32),
         jnp.ones((1, H), jnp.float32),
         jnp.full((1, H), 0.5, jnp.float32)], axis=1)    # [1, 4H]
    gate_scale = jnp.broadcast_to(gate_scale, (B, 4 * H))

    h = jnp.zeros((B, H), jnp.float32)
    c = jnp.zeros((B, H), jnp.float32)
    h_list = []
    score_cols = []
    # T is small & static -> full static unroll; hidden states stay in vregs.
    for t in range(T):
        gates = xg[t * B:(t + 1) * B, :] + jnp.dot(
            h.astype(bf16), whh, preferred_element_type=jnp.float32)
        tg = jnp.tanh(gates * gate_scale)                # single EUP pass
        i = 0.5 * (tg[:, 0:H] + 1.0)
        f = 0.5 * (tg[:, H:2 * H] + 1.0)
        g = tg[:, 2 * H:3 * H]
        o = 0.5 * (tg[:, 3 * H:4 * H] + 1.0)
        c = f * c + i * g
        h = o * jnp.tanh(c)
        h_list.append(h)
        # Per-step attention score, interleaved with the recurrence so the
        # scheduler can hide it inside the per-step MXU/EUP bubbles.
        mh_t = jnp.tanh(jnp.dot(h.astype(bf16), whT,
                                preferred_element_type=jnp.float32))   # [B, H]
        score_cols.append(jnp.sum(mh_t * wh_b, axis=-1, keepdims=True))

    h_last = h_list[-1]                                  # == H_t[:, -1, :]

    # ------------- softmax over time -------------
    # The aspect score tanh(asp @ Wv^T) . w[H:] is constant over the time axis,
    # so it cancels in the softmax and is omitted entirely.
    score = jnp.concatenate(score_cols, axis=1)          # [B, T]
    score = score - jnp.max(score, axis=1, keepdims=True)
    ex = jnp.exp(score)
    alpha = ex / jnp.sum(ex, axis=1, keepdims=True)      # [B, T]

    # Context r = sum_t alpha_t * h_t, fully register-resident (no scratch).
    r = alpha[:, 0:1] * h_list[0]
    for t in range(1, T):
        r = r + alpha[:, t:t + 1] * h_list[t]            # [B, H]

    # ------------- head: fused Wp/Wx matmul, then fc -------------
    rh = jnp.concatenate([r, h_last], axis=1)            # [B, 2H]
    hs = jnp.tanh(jnp.dot(rh.astype(bf16), wpx_ref[...],
                          preferred_element_type=jnp.float32))          # [B, H]
    # dropout == identity at inference
    out_ref[...] = (jnp.dot(hs.astype(bf16), fcwT_ref[...],
                            preferred_element_type=jnp.float32)
                    + fcb_ref[...])                                     # [B, C]


# ------------------------------- Wrapper --------------------------------------
def ae_lstm_forward(x_ids, aspect_ids, p):
    del aspect_ids  # output is independent of the aspect (constant softmax shift)
    H = p["Wh"].shape[0]
    C = p["fc_w"].shape[0]
    B, T = x_ids.shape
    bf16 = jnp.bfloat16

    vmem = pl.BlockSpec(memory_space=pltpu.MemorySpace.VMEM)
    smem = pl.BlockSpec(memory_space=pltpu.MemorySpace.SMEM)

    return pl.pallas_call(
        ae_lstm_fused_kernel,
        out_shape=jax.ShapeDtypeStruct((B, C), jnp.float32),
        in_specs=[smem] + [vmem] * 9,
        out_specs=vmem,
    )(
        x_ids.astype(jnp.int32),                                # [B, T] (SMEM)
        p["embed"],                                             # [V, E]
        p["W_ih"].T.astype(bf16),                               # [E, 4H]
        p["W_hh"].T.astype(bf16),                               # [H, 4H]
        (p["b_ih"] + p["b_hh"]).reshape(1, 4 * H),              # [1, 4H]
        p["Wh"].T.astype(bf16),                                 # [H, H]
        p["w"][:H].reshape(1, H),                               # [1, H]
        jnp.concatenate([p["Wp"], p["Wx"]], axis=0).astype(bf16),  # [2H, H]
        p["fc_w"].T.astype(bf16),                               # [H, C]
        p["fc_b"].reshape(1, C),                                # [1, C]
    )


# --------------------------- Pure-JAX reference --------------------------------
def ae_lstm_reference(x_ids, aspect_ids, p):
    H = p["Wh"].shape[0]
    x = jnp.take(p["embed"], x_ids, axis=0)
    asp = jnp.take(p["embed"], aspect_ids, axis=0).sum(axis=1)
    B, T, E = x.shape

    def step(carry, x_t):
        h, c = carry
        gates = x_t @ p["W_ih"].T + p["b_ih"] + h @ p["W_hh"].T + p["b_hh"]
        i = jax.nn.sigmoid(gates[:, 0:H])
        f = jax.nn.sigmoid(gates[:, H:2 * H])
        g = jnp.tanh(gates[:, 2 * H:3 * H])
        o = jax.nn.sigmoid(gates[:, 3 * H:4 * H])
        c = f * c + i * g
        h = o * jnp.tanh(c)
        return (h, c), h

    h0 = jnp.zeros((B, H), jnp.float32)
    (_, _), H_tm = jax.lax.scan(step, (h0, h0), jnp.transpose(x, (1, 0, 2)))
    H_t = jnp.transpose(H_tm, (1, 0, 2))

    asp_mat = jnp.broadcast_to(asp[:, None, :], (B, T, E))
    M = jnp.tanh(jnp.concatenate([H_t @ p["Wh"].T, asp_mat @ p["Wv"].T], axis=-1))
    alpha = jax.nn.softmax(M @ p["w"], axis=1)
    r = jnp.einsum("bt,bth->bh", alpha, H_t)
    hs = jnp.tanh(r @ p["Wp"] + H_t[:, -1, :] @ p["Wx"])
    return hs @ p["fc_w"].T + p["fc_b"]


# ---------------------------------- Main ---------------------------------------
if __name__ == "__main__":
    # args (small, synthetic)
    V, E, H, C = 50, 32, 32, 4          # embed_num, embed_dim, hidden_size, class_num
    B, T, T_ASP = 2, 8, 3
    NUM_LAYERS = 1                       # num_layers fixed to 1 for this kernel

    key = jax.random.PRNGKey(0)
    ks = jax.random.split(key, 16)
    u = 1.0 / sqrt(H)
    uni = lambda k, shape, s: jax.random.uniform(k, shape, jnp.float32, -s, s)

    params = {
        "Wh": uni(ks[0], (H, H), u),
        "Wv": uni(ks[1], (E, E), u),
        "w": uni(ks[2], (H + E,), u),
        "Wx": uni(ks[3], (H, H), u),
        "Wp": uni(ks[4], (H, H), u),
        "embed": jax.random.normal(ks[5], (V, E), jnp.float32) * 0.1,
        "W_ih": uni(ks[6], (4 * H, E), u),
        "W_hh": uni(ks[7], (4 * H, H), u),
        "b_ih": uni(ks[8], (4 * H,), u),
        "b_hh": uni(ks[9], (4 * H,), u),
        "fc_w": uni(ks[10], (C, H), u),
        "fc_b": uni(ks[11], (C,), u),
    }

    x_ids = jax.random.randint(ks[12], (B, T), 0, V, dtype=jnp.int32)
    aspect_ids = jax.random.randint(ks[13], (B, T_ASP), 0, V, dtype=jnp.int32)

    fwd = jax.jit(ae_lstm_forward)
    out = jax.block_until_ready(fwd(x_ids, aspect_ids, params))
    ref = jax.block_until_ready(ae_lstm_reference(x_ids, aspect_ids, params))

    assert out.shape == (B, C)
    # bf16 MXU operands (f32 accumulation) -> slightly looser tolerance than
    # the pure-f32 reference; estimated worst-case drift is ~1e-3.
    assert jnp.allclose(out, ref, rtol=1e-2, atol=1e-2), (out, ref)
    print("KERNEL_OK")
</pallas_src>

<mosaic_0001>
module attributes {stable_mosaic.version = 11 : i64} {
  func.func @ae_lstm_fused_kernel(%arg0: memref<2x8xi32, #tpu.memory_space<smem>>, %arg1: memref<50x32xf32, #tpu.memory_space<vmem>>, %arg2: memref<32x128xbf16, #tpu.memory_space<vmem>>, %arg3: memref<32x128xbf16, #tpu.memory_space<vmem>>, %arg4: memref<1x128xf32, #tpu.memory_space<vmem>>, %arg5: memref<32x32xbf16, #tpu.memory_space<vmem>>, %arg6: memref<1x32xf32, #tpu.memory_space<vmem>>, %arg7: memref<64x32xbf16, #tpu.memory_space<vmem>>, %arg8: memref<32x4xbf16, #tpu.memory_space<vmem>>, %arg9: memref<1x4xf32, #tpu.memory_space<vmem>>, %arg10: memref<2x4xf32, #tpu.memory_space<vmem>>) attributes {dimension_semantics = [], scalar_prefetch = 0 : i64, scratch_operands = 0 : i64, tpu.core_type = #tpu.core_type<tc>} {
    %c0 = arith.constant 0 : index
    %c0_0 = arith.constant 0 : index
    %0 = memref.load %arg0[%c0, %c0_0] : memref<2x8xi32, #tpu.memory_space<smem>>
    %1 = arith.index_cast %0 : i32 to index
    %c0_1 = arith.constant 0 : index
    %2 = vector.load %arg1[%1, %c0_1] : memref<50x32xf32, #tpu.memory_space<vmem>>, vector<1x32xf32>
    %c1 = arith.constant 1 : index
    %c0_2 = arith.constant 0 : index
    %3 = memref.load %arg0[%c1, %c0_2] : memref<2x8xi32, #tpu.memory_space<smem>>
    %4 = arith.index_cast %3 : i32 to index
    %c0_3 = arith.constant 0 : index
    %5 = vector.load %arg1[%4, %c0_3] : memref<50x32xf32, #tpu.memory_space<vmem>>, vector<1x32xf32>
    %c0_4 = arith.constant 0 : index
    %c1_5 = arith.constant 1 : index
    %6 = memref.load %arg0[%c0_4, %c1_5] : memref<2x8xi32, #tpu.memory_space<smem>>
    %7 = arith.index_cast %6 : i32 to index
    %c0_6 = arith.constant 0 : index
    %8 = vector.load %arg1[%7, %c0_6] : memref<50x32xf32, #tpu.memory_space<vmem>>, vector<1x32xf32>
    %c1_7 = arith.constant 1 : index
    %c1_8 = arith.constant 1 : index
    %9 = memref.load %arg0[%c1_7, %c1_8] : memref<2x8xi32, #tpu.memory_space<smem>>
    %10 = arith.index_cast %9 : i32 to index
    %c0_9 = arith.constant 0 : index
    %11 = vector.load %arg1[%10, %c0_9] : memref<50x32xf32, #tpu.memory_space<vmem>>, vector<1x32xf32>
    %c0_10 = arith.constant 0 : index
    %c2 = arith.constant 2 : index
    %12 = memref.load %arg0[%c0_10, %c2] : memref<2x8xi32, #tpu.memory_space<smem>>
    %13 = arith.index_cast %12 : i32 to index
    %c0_11 = arith.constant 0 : index
    %14 = vector.load %arg1[%13, %c0_11] : memref<50x32xf32, #tpu.memory_space<vmem>>, vector<1x32xf32>
    %c1_12 = arith.constant 1 : index
    %c2_13 = arith.constant 2 : index
    %15 = memref.load %arg0[%c1_12, %c2_13] : memref<2x8xi32, #tpu.memory_space<smem>>
    %16 = arith.index_cast %15 : i32 to index
    %c0_14 = arith.constant 0 : index
    %17 = vector.load %arg1[%16, %c0_14] : memref<50x32xf32, #tpu.memory_space<vmem>>, vector<1x32xf32>
    %c0_15 = arith.constant 0 : index
    %c3 = arith.constant 3 : index
    %18 = memref.load %arg0[%c0_15, %c3] : memref<2x8xi32, #tpu.memory_space<smem>>
    %19 = arith.index_cast %18 : i32 to index
    %c0_16 = arith.constant 0 : index
    %20 = vector.load %arg1[%19, %c0_16] : memref<50x32xf32, #tpu.memory_space<vmem>>, vector<1x32xf32>
    %c1_17 = arith.constant 1 : index
    %c3_18 = arith.constant 3 : index
    %21 = memref.load %arg0[%c1_17, %c3_18] : memref<2x8xi32, #tpu.memory_space<smem>>
    %22 = arith.index_cast %21 : i32 to index
    %c0_19 = arith.constant 0 : index
    %23 = vector.load %arg1[%22, %c0_19] : memref<50x32xf32, #tpu.memory_space<vmem>>, vector<1x32xf32>
    %c0_20 = arith.constant 0 : index
    %c4 = arith.constant 4 : index
    %24 = memref.load %arg0[%c0_20, %c4] : memref<2x8xi32, #tpu.memory_space<smem>>
    %25 = arith.index_cast %24 : i32 to index
    %c0_21 = arith.constant 0 : index
    %26 = vector.load %arg1[%25, %c0_21] : memref<50x32xf32, #tpu.memory_space<vmem>>, vector<1x32xf32>
    %c1_22 = arith.constant 1 : index
    %c4_23 = arith.constant 4 : index
    %27 = memref.load %arg0[%c1_22, %c4_23] : memref<2x8xi32, #tpu.memory_space<smem>>
    %28 = arith.index_cast %27 : i32 to index
    %c0_24 = arith.constant 0 : index
    %29 = vector.load %arg1[%28, %c0_24] : memref<50x32xf32, #tpu.memory_space<vmem>>, vector<1x32xf32>
    %c0_25 = arith.constant 0 : index
    %c5 = arith.constant 5 : index
    %30 = memref.load %arg0[%c0_25, %c5] : memref<2x8xi32, #tpu.memory_space<smem>>
    %31 = arith.index_cast %30 : i32 to index
    %c0_26 = arith.constant 0 : index
    %32 = vector.load %arg1[%31, %c0_26] : memref<50x32xf32, #tpu.memory_space<vmem>>, vector<1x32xf32>
    %c1_27 = arith.constant 1 : index
    %c5_28 = arith.constant 5 : index
    %33 = memref.load %arg0[%c1_27, %c5_28] : memref<2x8xi32, #tpu.memory_space<smem>>
    %34 = arith.index_cast %33 : i32 to index
    %c0_29 = arith.constant 0 : index
    %35 = vector.load %arg1[%34, %c0_29] : memref<50x32xf32, #tpu.memory_space<vmem>>, vector<1x32xf32>
    %c0_30 = arith.constant 0 : index
    %c6 = arith.constant 6 : index
    %36 = memref.load %arg0[%c0_30, %c6] : memref<2x8xi32, #tpu.memory_space<smem>>
    %37 = arith.index_cast %36 : i32 to index
    %c0_31 = arith.constant 0 : index
    %38 = vector.load %arg1[%37, %c0_31] : memref<50x32xf32, #tpu.memory_space<vmem>>, vector<1x32xf32>
    %c1_32 = arith.constant 1 : index
    %c6_33 = arith.constant 6 : index
    %39 = memref.load %arg0[%c1_32, %c6_33] : memref<2x8xi32, #tpu.memory_space<smem>>
    %40 = arith.index_cast %39 : i32 to index
    %c0_34 = arith.constant 0 : index
    %41 = vector.load %arg1[%40, %c0_34] : memref<50x32xf32, #tpu.memory_space<vmem>>, vector<1x32xf32>
    %c0_35 = arith.constant 0 : index
    %c7 = arith.constant 7 : index
    %42 = memref.load %arg0[%c0_35, %c7] : memref<2x8xi32, #tpu.memory_space<smem>>
    %43 = arith.index_cast %42 : i32 to index
    %c0_36 = arith.constant 0 : index
    %44 = vector.load %arg1[%43, %c0_36] : memref<50x32xf32, #tpu.memory_space<vmem>>, vector<1x32xf32>
    %c1_37 = arith.constant 1 : index
    %c7_38 = arith.constant 7 : index
    %45 = memref.load %arg0[%c1_37, %c7_38] : memref<2x8xi32, #tpu.memory_space<smem>>
    %46 = arith.index_cast %45 : i32 to index
    %c0_39 = arith.constant 0 : index
    %47 = vector.load %arg1[%46, %c0_39] : memref<50x32xf32, #tpu.memory_space<vmem>>, vector<1x32xf32>
    %48 = tpu.concatenate %2, %5, %8, %11, %14, %17, %20, %23, %26, %29, %32, %35, %38, %41, %44, %47 in 0 : vector<1x32xf32>, vector<1x32xf32>, vector<1x32xf32>, vector<1x32xf32>, vector<1x32xf32>, vector<1x32xf32>, vector<1x32xf32>, vector<1x32xf32>, vector<1x32xf32>, vector<1x32xf32>, vector<1x32xf32>, vector<1x32xf32>, vector<1x32xf32>, vector<1x32xf32>, vector<1x32xf32>, vector<1x32xf32> -> vector<16x32xf32>
    %49 = arith.truncf %48 : vector<16x32xf32> to vector<16x32xbf16>
    %c0_40 = arith.constant 0 : index
    %c0_41 = arith.constant 0 : index
    %50 = vector.load %arg2[%c0_40, %c0_41] : memref<32x128xbf16, #tpu.memory_space<vmem>>, vector<32x128xbf16>
    %cst = arith.constant dense<0.000000e+00> : vector<16x128xf32>
    %51 = tpu.matmul %49, %50, %cst {dimension_numbers = #tpu.dot_dimension_numbers<[1], [0], [0], [1], [0, 0, 1, 1], [], []>} : vector<16x32xbf16>, vector<32x128xbf16>, vector<16x128xf32> -> vector<16x128xf32>
    %c0_42 = arith.constant 0 : index
    %c0_43 = arith.constant 0 : index
    %52 = vector.load %arg4[%c0_42, %c0_43] : memref<1x128xf32, #tpu.memory_space<vmem>>, vector<1x128xf32>
    %53 = vector.broadcast %52 : vector<1x128xf32> to vector<16x128xf32>
    %54 = arith.addf %51, %53 : vector<16x128xf32>
    %c0_44 = arith.constant 0 : index
    %c0_45 = arith.constant 0 : index
    %55 = vector.load %arg3[%c0_44, %c0_45] : memref<32x128xbf16, #tpu.memory_space<vmem>>, vector<32x128xbf16>
    %c0_46 = arith.constant 0 : index
    %c0_47 = arith.constant 0 : index
    %56 = vector.load %arg5[%c0_46, %c0_47] : memref<32x32xbf16, #tpu.memory_space<vmem>>, vector<32x32xbf16>
    %c0_48 = arith.constant 0 : index
    %c0_49 = arith.constant 0 : index
    %57 = vector.load %arg6[%c0_48, %c0_49] : memref<1x32xf32, #tpu.memory_space<vmem>>, vector<1x32xf32>
    %58 = vector.shape_cast %57 : vector<1x32xf32> to vector<1x32xf32>
    %59 = vector.broadcast %58 : vector<1x32xf32> to vector<2x32xf32>
    %cst_50 = arith.constant 5.000000e-01 : f32
    %60 = vector.broadcast %cst_50 : f32 to vector<1x32xf32>
    %cst_51 = arith.constant 5.000000e-01 : f32
    %61 = vector.broadcast %cst_51 : f32 to vector<1x32xf32>
    %cst_52 = arith.constant 1.000000e+00 : f32
    %62 = vector.broadcast %cst_52 : f32 to vector<1x32xf32>
    %cst_53 = arith.constant 5.000000e-01 : f32
    %63 = vector.broadcast %cst_53 : f32 to vector<1x32xf32>
    %64 = tpu.concatenate %60, %61, %62, %63 in 1 : vector<1x32xf32>, vector<1x32xf32>, vector<1x32xf32>, vector<1x32xf32> -> vector<1x128xf32>
    %65 = vector.shape_cast %64 : vector<1x128xf32> to vector<1x128xf32>
    %66 = vector.broadcast %65 : vector<1x128xf32> to vector<2x128xf32>
    %cst_54 = arith.constant 0.000000e+00 : f32
    %67 = vector.broadcast %cst_54 : f32 to vector<2x32xf32>
    %cst_55 = arith.constant 0.000000e+00 : f32
    %68 = vector.broadcast %cst_55 : f32 to vector<2x32xf32>
    %69 = vector.extract_strided_slice %54 {offsets = [0, 0], sizes = [2, 128], strides = [1, 1]} : vector<16x128xf32> to vector<2x128xf32>
    %70 = arith.truncf %67 : vector<2x32xf32> to vector<2x32xbf16>
    %cst_56 = arith.constant dense<0.000000e+00> : vector<2x128xf32>
    %71 = tpu.matmul %70, %55, %cst_56 {dimension_numbers = #tpu.dot_dimension_numbers<[1], [0], [0], [1], [0, 0, 1, 1], [], []>} : vector<2x32xbf16>, vector<32x128xbf16>, vector<2x128xf32> -> vector<2x128xf32>
    %72 = arith.addf %69, %71 : vector<2x128xf32>
    %73 = arith.mulf %72, %66 : vector<2x128xf32>
    %74 = math.tanh %73 : vector<2x128xf32>
    %75 = vector.extract_strided_slice %74 {offsets = [0, 0], sizes = [2, 32], strides = [1, 1]} : vector<2x128xf32> to vector<2x32xf32>
    %cst_57 = arith.constant 1.000000e+00 : f32
    %76 = vector.broadcast %cst_57 : f32 to vector<2x32xf32>
    %77 = arith.addf %75, %76 : vector<2x32xf32>
    %cst_58 = arith.constant 5.000000e-01 : f32
    %78 = vector.broadcast %cst_58 : f32 to vector<2x32xf32>
    %79 = arith.mulf %78, %77 : vector<2x32xf32>
    %80 = vector.extract_strided_slice %74 {offsets = [0, 32], sizes = [2, 32], strides = [1, 1]} : vector<2x128xf32> to vector<2x32xf32>
    %cst_59 = arith.constant 1.000000e+00 : f32
    %81 = vector.broadcast %cst_59 : f32 to vector<2x32xf32>
    %82 = arith.addf %80, %81 : vector<2x32xf32>
    %cst_60 = arith.constant 5.000000e-01 : f32
    %83 = vector.broadcast %cst_60 : f32 to vector<2x32xf32>
    %84 = arith.mulf %83, %82 : vector<2x32xf32>
    %85 = vector.extract_strided_slice %74 {offsets = [0, 64], sizes = [2, 32], strides = [1, 1]} : vector<2x128xf32> to vector<2x32xf32>
    %86 = vector.extract_strided_slice %74 {offsets = [0, 96], sizes = [2, 32], strides = [1, 1]} : vector<2x128xf32> to vector<2x32xf32>
    %cst_61 = arith.constant 1.000000e+00 : f32
    %87 = vector.broadcast %cst_61 : f32 to vector<2x32xf32>
    %88 = arith.addf %86, %87 : vector<2x32xf32>
    %cst_62 = arith.constant 5.000000e-01 : f32
    %89 = vector.broadcast %cst_62 : f32 to vector<2x32xf32>
    %90 = arith.mulf %89, %88 : vector<2x32xf32>
    %91 = arith.mulf %84, %68 : vector<2x32xf32>
    %92 = arith.mulf %79, %85 : vector<2x32xf32>
    %93 = arith.addf %91, %92 : vector<2x32xf32>
    %94 = math.tanh %93 : vector<2x32xf32>
    %95 = arith.mulf %90, %94 : vector<2x32xf32>
    %96 = arith.truncf %95 : vector<2x32xf32> to vector<2x32xbf16>
    %cst_63 = arith.constant dense<0.000000e+00> : vector<2x32xf32>
    %97 = tpu.matmul %96, %56, %cst_63 {dimension_numbers = #tpu.dot_dimension_numbers<[1], [0], [0], [1], [0, 0, 1, 1], [], []>} : vector<2x32xbf16>, vector<32x32xbf16>, vector<2x32xf32> -> vector<2x32xf32>
    %98 = math.tanh %97 : vector<2x32xf32>
    %99 = arith.mulf %98, %59 : vector<2x32xf32>
    %cst_64 = arith.constant dense<0.000000e+00> : vector<2xf32>
    %100 = vector.multi_reduction <add>, %99, %cst_64 [1] : vector<2x32xf32> to vector<2xf32>
    %101 = vector.shape_cast %100 : vector<2xf32> to vector<2x1xf32>
    %102 = vector.extract_strided_slice %54 {offsets = [2, 0], sizes = [2, 128], strides = [1, 1]} : vector<16x128xf32> to vector<2x128xf32>
    %103 = arith.truncf %95 : vector<2x32xf32> to vector<2x32xbf16>
    %cst_65 = arith.constant dense<0.000000e+00> : vector<2x128xf32>
    %104 = tpu.matmul %103, %55, %cst_65 {dimension_numbers = #tpu.dot_dimension_numbers<[1], [0], [0], [1], [0, 0, 1, 1], [], []>} : vector<2x32xbf16>, vector<32x128xbf16>, vector<2x128xf32> -> vector<2x128xf32>
    %105 = arith.addf %102, %104 : vector<2x128xf32>
    %106 = arith.mulf %105, %66 : vector<2x128xf32>
    %107 = math.tanh %106 : vector<2x128xf32>
    %108 = vector.extract_strided_slice %107 {offsets = [0, 0], sizes = [2, 32], strides = [1, 1]} : vector<2x128xf32> to vector<2x32xf32>
    %cst_66 = arith.constant 1.000000e+00 : f32
    %109 = vector.broadcast %cst_66 : f32 to vector<2x32xf32>
    %110 = arith.addf %108, %109 : vector<2x32xf32>
    %cst_67 = arith.constant 5.000000e-01 : f32
    %111 = vector.broadcast %cst_67 : f32 to vector<2x32xf32>
    %112 = arith.mulf %111, %110 : vector<2x32xf32>
    %113 = vector.extract_strided_slice %107 {offsets = [0, 32], sizes = [2, 32], strides = [1, 1]} : vector<2x128xf32> to vector<2x32xf32>
    %cst_68 = arith.constant 1.000000e+00 : f32
    %114 = vector.broadcast %cst_68 : f32 to vector<2x32xf32>
    %115 = arith.addf %113, %114 : vector<2x32xf32>
    %cst_69 = arith.constant 5.000000e-01 : f32
    %116 = vector.broadcast %cst_69 : f32 to vector<2x32xf32>
    %117 = arith.mulf %116, %115 : vector<2x32xf32>
    %118 = vector.extract_strided_slice %107 {offsets = [0, 64], sizes = [2, 32], strides = [1, 1]} : vector<2x128xf32> to vector<2x32xf32>
    %119 = vector.extract_strided_slice %107 {offsets = [0, 96], sizes = [2, 32], strides = [1, 1]} : vector<2x128xf32> to vector<2x32xf32>
    %cst_70 = arith.constant 1.000000e+00 : f32
    %120 = vector.broadcast %cst_70 : f32 to vector<2x32xf32>
    %121 = arith.addf %119, %120 : vector<2x32xf32>
    %cst_71 = arith.constant 5.000000e-01 : f32
    %122 = vector.broadcast %cst_71 : f32 to vector<2x32xf32>
    %123 = arith.mulf %122, %121 : vector<2x32xf32>
    %124 = arith.mulf %117, %93 : vector<2x32xf32>
    %125 = arith.mulf %112, %118 : vector<2x32xf32>
    %126 = arith.addf %124, %125 : vector<2x32xf32>
    %127 = math.tanh %126 : vector<2x32xf32>
    %128 = arith.mulf %123, %127 : vector<2x32xf32>
    %129 = arith.truncf %128 : vector<2x32xf32> to vector<2x32xbf16>
    %cst_72 = arith.constant dense<0.000000e+00> : vector<2x32xf32>
    %130 = tpu.matmul %129, %56, %cst_72 {dimension_numbers = #tpu.dot_dimension_numbers<[1], [0], [0], [1], [0, 0, 1, 1], [], []>} : vector<2x32xbf16>, vector<32x32xbf16>, vector<2x32xf32> -> vector<2x32xf32>
    %131 = math.tanh %130 : vector<2x32xf32>
    %132 = arith.mulf %131, %59 : vector<2x32xf32>
    %cst_73 = arith.constant dense<0.000000e+00> : vector<2xf32>
    %133 = vector.multi_reduction <add>, %132, %cst_73 [1] : vector<2x32xf32> to vector<2xf32>
    %134 = vector.shape_cast %133 : vector<2xf32> to vector<2x1xf32>
    %135 = vector.extract_strided_slice %54 {offsets = [4, 0], sizes = [2, 128], strides = [1, 1]} : vector<16x128xf32> to vector<2x128xf32>
    %136 = arith.truncf %128 : vector<2x32xf32> to vector<2x32xbf16>
    %cst_74 = arith.constant dense<0.000000e+00> : vector<2x128xf32>
    %137 = tpu.matmul %136, %55, %cst_74 {dimension_numbers = #tpu.dot_dimension_numbers<[1], [0], [0], [1], [0, 0, 1, 1], [], []>} : vector<2x32xbf16>, vector<32x128xbf16>, vector<2x128xf32> -> vector<2x128xf32>
    %138 = arith.addf %135, %137 : vector<2x128xf32>
    %139 = arith.mulf %138, %66 : vector<2x128xf32>
    %140 = math.tanh %139 : vector<2x128xf32>
    %141 = vector.extract_strided_slice %140 {offsets = [0, 0], sizes = [2, 32], strides = [1, 1]} : vector<2x128xf32> to vector<2x32xf32>
    %cst_75 = arith.constant 1.000000e+00 : f32
    %142 = vector.broadcast %cst_75 : f32 to vector<2x32xf32>
    %143 = arith.addf %141, %142 : vector<2x32xf32>
    %cst_76 = arith.constant 5.000000e-01 : f32
    %144 = vector.broadcast %cst_76 : f32 to vector<2x32xf32>
    %145 = arith.mulf %144, %143 : vector<2x32xf32>
    %146 = vector.extract_strided_slice %140 {offsets = [0, 32], sizes = [2, 32], strides = [1, 1]} : vector<2x128xf32> to vector<2x32xf32>
    %cst_77 = arith.constant 1.000000e+00 : f32
    %147 = vector.broadcast %cst_77 : f32 to vector<2x32xf32>
    %148 = arith.addf %146, %147 : vector<2x32xf32>
    %cst_78 = arith.constant 5.000000e-01 : f32
    %149 = vector.broadcast %cst_78 : f32 to vector<2x32xf32>
    %150 = arith.mulf %149, %148 : vector<2x32xf32>
    %151 = vector.extract_strided_slice %140 {offsets = [0, 64], sizes = [2, 32], strides = [1, 1]} : vector<2x128xf32> to vector<2x32xf32>
    %152 = vector.extract_strided_slice %140 {offsets = [0, 96], sizes = [2, 32], strides = [1, 1]} : vector<2x128xf32> to vector<2x32xf32>
    %cst_79 = arith.constant 1.000000e+00 : f32
    %153 = vector.broadcast %cst_79 : f32 to vector<2x32xf32>
    %154 = arith.addf %152, %153 : vector<2x32xf32>
    %cst_80 = arith.constant 5.000000e-01 : f32
    %155 = vector.broadcast %cst_80 : f32 to vector<2x32xf32>
    %156 = arith.mulf %155, %154 : vector<2x32xf32>
    %157 = arith.mulf %150, %126 : vector<2x32xf32>
    %158 = arith.mulf %145, %151 : vector<2x32xf32>
    %159 = arith.addf %157, %158 : vector<2x32xf32>
    %160 = math.tanh %159 : vector<2x32xf32>
    %161 = arith.mulf %156, %160 : vector<2x32xf32>
    %162 = arith.truncf %161 : vector<2x32xf32> to vector<2x32xbf16>
    %cst_81 = arith.constant dense<0.000000e+00> : vector<2x32xf32>
    %163 = tpu.matmul %162, %56, %cst_81 {dimension_numbers = #tpu.dot_dimension_numbers<[1], [0], [0], [1], [0, 0, 1, 1], [], []>} : vector<2x32xbf16>, vector<32x32xbf16>, vector<2x32xf32> -> vector<2x32xf32>
    %164 = math.tanh %163 : vector<2x32xf32>
    %165 = arith.mulf %164, %59 : vector<2x32xf32>
    %cst_82 = arith.constant dense<0.000000e+00> : vector<2xf32>
    %166 = vector.multi_reduction <add>, %165, %cst_82 [1] : vector<2x32xf32> to vector<2xf32>
    %167 = vector.shape_cast %166 : vector<2xf32> to vector<2x1xf32>
    %168 = vector.extract_strided_slice %54 {offsets = [6, 0], sizes = [2, 128], strides = [1, 1]} : vector<16x128xf32> to vector<2x128xf32>
    %169 = arith.truncf %161 : vector<2x32xf32> to vector<2x32xbf16>
    %cst_83 = arith.constant dense<0.000000e+00> : vector<2x128xf32>
    %170 = tpu.matmul %169, %55, %cst_83 {dimension_numbers = #tpu.dot_dimension_numbers<[1], [0], [0], [1], [0, 0, 1, 1], [], []>} : vector<2x32xbf16>, vector<32x128xbf16>, vector<2x128xf32> -> vector<2x128xf32>
    %171 = arith.addf %168, %170 : vector<2x128xf32>
    %172 = arith.mulf %171, %66 : vector<2x128xf32>
    %173 = math.tanh %172 : vector<2x128xf32>
    %174 = vector.extract_strided_slice %173 {offsets = [0, 0], sizes = [2, 32], strides = [1, 1]} : vector<2x128xf32> to vector<2x32xf32>
    %cst_84 = arith.constant 1.000000e+00 : f32
    %175 = vector.broadcast %cst_84 : f32 to vector<2x32xf32>
    %176 = arith.addf %174, %175 : vector<2x32xf32>
    %cst_85 = arith.constant 5.000000e-01 : f32
    %177 = vector.broadcast %cst_85 : f32 to vector<2x32xf32>
    %178 = arith.mulf %177, %176 : vector<2x32xf32>
    %179 = vector.extract_strided_slice %173 {offsets = [0, 32], sizes = [2, 32], strides = [1, 1]} : vector<2x128xf32> to vector<2x32xf32>
    %cst_86 = arith.constant 1.000000e+00 : f32
    %180 = vector.broadcast %cst_86 : f32 to vector<2x32xf32>
    %181 = arith.addf %179, %180 : vector<2x32xf32>
    %cst_87 = arith.constant 5.000000e-01 : f32
    %182 = vector.broadcast %cst_87 : f32 to vector<2x32xf32>
    %183 = arith.mulf %182, %181 : vector<2x32xf32>
    %184 = vector.extract_strided_slice %173 {offsets = [0, 64], sizes = [2, 32], strides = [1, 1]} : vector<2x128xf32> to vector<2x32xf32>
    %185 = vector.extract_strided_slice %173 {offsets = [0, 96], sizes = [2, 32], strides = [1, 1]} : vector<2x128xf32> to vector<2x32xf32>
    %cst_88 = arith.constant 1.000000e+00 : f32
    %186 = vector.broadcast %cst_88 : f32 to vector<2x32xf32>
    %187 = arith.addf %185, %186 : vector<2x32xf32>
    %cst_89 = arith.constant 5.000000e-01 : f32
    %188 = vector.broadcast %cst_89 : f32 to vector<2x32xf32>
    %189 = arith.mulf %188, %187 : vector<2x32xf32>
    %190 = arith.mulf %183, %159 : vector<2x32xf32>
    %191 = arith.mulf %178, %184 : vector<2x32xf32>
    %192 = arith.addf %190, %191 : vector<2x32xf32>
    %193 = math.tanh %192 : vector<2x32xf32>
    %194 = arith.mulf %189, %193 : vector<2x32xf32>
    %195 = arith.truncf %194 : vector<2x32xf32> to vector<2x32xbf16>
    %cst_90 = arith.constant dense<0.000000e+00> : vector<2x32xf32>
    %196 = tpu.matmul %195, %56, %cst_90 {dimension_numbers = #tpu.dot_dimension_numbers<[1], [0], [0], [1], [0, 0, 1, 1], [], []>} : vector<2x32xbf16>, vector<32x32xbf16>, vector<2x32xf32> -> vector<2x32xf32>
    %197 = math.tanh %196 : vector<2x32xf32>
    %198 = arith.mulf %197, %59 : vector<2x32xf32>
    %cst_91 = arith.constant dense<0.000000e+00> : vector<2xf32>
    %199 = vector.multi_reduction <add>, %198, %cst_91 [1] : vector<2x32xf32> to vector<2xf32>
    %200 = vector.shape_cast %199 : vector<2xf32> to vector<2x1xf32>
    %201 = vector.extract_strided_slice %54 {offsets = [8, 0], sizes = [2, 128], strides = [1, 1]} : vector<16x128xf32> to vector<2x128xf32>
    %202 = arith.truncf %194 : vector<2x32xf32> to vector<2x32xbf16>
    %cst_92 = arith.constant dense<0.000000e+00> : vector<2x128xf32>
    %203 = tpu.matmul %202, %55, %cst_92 {dimension_numbers = #tpu.dot_dimension_numbers<[1], [0], [0], [1], [0, 0, 1, 1], [], []>} : vector<2x32xbf16>, vector<32x128xbf16>, vector<2x128xf32> -> vector<2x128xf32>
    %204 = arith.addf %201, %203 : vector<2x128xf32>
    %205 = arith.mulf %204, %66 : vector<2x128xf32>
    %206 = math.tanh %205 : vector<2x128xf32>
    %207 = vector.extract_strided_slice %206 {offsets = [0, 0], sizes = [2, 32], strides = [1, 1]} : vector<2x128xf32> to vector<2x32xf32>
    %cst_93 = arith.constant 1.000000e+00 : f32
    %208 = vector.broadcast %cst_93 : f32 to vector<2x32xf32>
    %209 = arith.addf %207, %208 : vector<2x32xf32>
    %cst_94 = arith.constant 5.000000e-01 : f32
    %210 = vector.broadcast %cst_94 : f32 to vector<2x32xf32>
    %211 = arith.mulf %210, %209 : vector<2x32xf32>
    %212 = vector.extract_strided_slice %206 {offsets = [0, 32], sizes = [2, 32], strides = [1, 1]} : vector<2x128xf32> to vector<2x32xf32>
    %cst_95 = arith.constant 1.000000e+00 : f32
    %213 = vector.broadcast %cst_95 : f32 to vector<2x32xf32>
    %214 = arith.addf %212, %213 : vector<2x32xf32>
    %cst_96 = arith.constant 5.000000e-01 : f32
    %215 = vector.broadcast %cst_96 : f32 to vector<2x32xf32>
    %216 = arith.mulf %215, %214 : vector<2x32xf32>
    %217 = vector.extract_strided_slice %206 {offsets = [0, 64], sizes = [2, 32], strides = [1, 1]} : vector<2x128xf32> to vector<2x32xf32>
    %218 = vector.extract_strided_slice %206 {offsets = [0, 96], sizes = [2, 32], strides = [1, 1]} : vector<2x128xf32> to vector<2x32xf32>
    %cst_97 = arith.constant 1.000000e+00 : f32
    %219 = vector.broadcast %cst_97 : f32 to vector<2x32xf32>
    %220 = arith.addf %218, %219 : vector<2x32xf32>
    %cst_98 = arith.constant 5.000000e-01 : f32
    %221 = vector.broadcast %cst_98 : f32 to vector<2x32xf32>
    %222 = arith.mulf %221, %220 : vector<2x32xf32>
    %223 = arith.mulf %216, %192 : vector<2x32xf32>
    %224 = arith.mulf %211, %217 : vector<2x32xf32>
    %225 = arith.addf %223, %224 : vector<2x32xf32>
    %226 = math.tanh %225 : vector<2x32xf32>
    %227 = arith.mulf %222, %226 : vector<2x32xf32>
    %228 = arith.truncf %227 : vector<2x32xf32> to vector<2x32xbf16>
    %cst_99 = arith.constant dense<0.000000e+00> : vector<2x32xf32>
    %229 = tpu.matmul %228, %56, %cst_99 {dimension_numbers = #tpu.dot_dimension_numbers<[1], [0], [0], [1], [0, 0, 1, 1], [], []>} : vector<2x32xbf16>, vector<32x32xbf16>, vector<2x32xf32> -> vector<2x32xf32>
    %230 = math.tanh %229 : vector<2x32xf32>
    %231 = arith.mulf %230, %59 : vector<2x32xf32>
    %cst_100 = arith.constant dense<0.000000e+00> : vector<2xf32>
    %232 = vector.multi_reduction <add>, %231, %cst_100 [1] : vector<2x32xf32> to vector<2xf32>
    %233 = vector.shape_cast %232 : vector<2xf32> to vector<2x1xf32>
    %234 = vector.extract_strided_slice %54 {offsets = [10, 0], sizes = [2, 128], strides = [1, 1]} : vector<16x128xf32> to vector<2x128xf32>
    %235 = arith.truncf %227 : vector<2x32xf32> to vector<2x32xbf16>
    %cst_101 = arith.constant dense<0.000000e+00> : vector<2x128xf32>
    %236 = tpu.matmul %235, %55, %cst_101 {dimension_numbers = #tpu.dot_dimension_numbers<[1], [0], [0], [1], [0, 0, 1, 1], [], []>} : vector<2x32xbf16>, vector<32x128xbf16>, vector<2x128xf32> -> vector<2x128xf32>
    %237 = arith.addf %234, %236 : vector<2x128xf32>
    %238 = arith.mulf %237, %66 : vector<2x128xf32>
    %239 = math.tanh %238 : vector<2x128xf32>
    %240 = vector.extract_strided_slice %239 {offsets = [0, 0], sizes = [2, 32], strides = [1, 1]} : vector<2x128xf32> to vector<2x32xf32>
    %cst_102 = arith.constant 1.000000e+00 : f32
    %241 = vector.broadcast %cst_102 : f32 to vector<2x32xf32>
    %242 = arith.addf %240, %241 : vector<2x32xf32>
    %cst_103 = arith.constant 5.000000e-01 : f32
    %243 = vector.broadcast %cst_103 : f32 to vector<2x32xf32>
    %244 = arith.mulf %243, %242 : vector<2x32xf32>
    %245 = vector.extract_strided_slice %239 {offsets = [0, 32], sizes = [2, 32], strides = [1, 1]} : vector<2x128xf32> to vector<2x32xf32>
    %cst_104 = arith.constant 1.000000e+00 : f32
    %246 = vector.broadcast %cst_104 : f32 to vector<2x32xf32>
    %247 = arith.addf %245, %246 : vector<2x32xf32>
    %cst_105 = arith.constant 5.000000e-01 : f32
    %248 = vector.broadcast %cst_105 : f32 to vector<2x32xf32>
    %249 = arith.mulf %248, %247 : vector<2x32xf32>
    %250 = vector.extract_strided_slice %239 {offsets = [0, 64], sizes = [2, 32], strides = [1, 1]} : vector<2x128xf32> to vector<2x32xf32>
    %251 = vector.extract_strided_slice %239 {offsets = [0, 96], sizes = [2, 32], strides = [1, 1]} : vector<2x128xf32> to vector<2x32xf32>
    %cst_106 = arith.constant 1.000000e+00 : f32
    %252 = vector.broadcast %cst_106 : f32 to vector<2x32xf32>
    %253 = arith.addf %251, %252 : vector<2x32xf32>
    %cst_107 = arith.constant 5.000000e-01 : f32
    %254 = vector.broadcast %cst_107 : f32 to vector<2x32xf32>
    %255 = arith.mulf %254, %253 : vector<2x32xf32>
    %256 = arith.mulf %249, %225 : vector<2x32xf32>
    %257 = arith.mulf %244, %250 : vector<2x32xf32>
    %258 = arith.addf %256, %257 : vector<2x32xf32>
    %259 = math.tanh %258 : vector<2x32xf32>
    %260 = arith.mulf %255, %259 : vector<2x32xf32>
    %261 = arith.truncf %260 : vector<2x32xf32> to vector<2x32xbf16>
    %cst_108 = arith.constant dense<0.000000e+00> : vector<2x32xf32>
    %262 = tpu.matmul %261, %56, %cst_108 {dimension_numbers = #tpu.dot_dimension_numbers<[1], [0], [0], [1], [0, 0, 1, 1], [], []>} : vector<2x32xbf16>, vector<32x32xbf16>, vector<2x32xf32> -> vector<2x32xf32>
    %263 = math.tanh %262 : vector<2x32xf32>
    %264 = arith.mulf %263, %59 : vector<2x32xf32>
    %cst_109 = arith.constant dense<0.000000e+00> : vector<2xf32>
    %265 = vector.multi_reduction <add>, %264, %cst_109 [1] : vector<2x32xf32> to vector<2xf32>
    %266 = vector.shape_cast %265 : vector<2xf32> to vector<2x1xf32>
    %267 = vector.extract_strided_slice %54 {offsets = [12, 0], sizes = [2, 128], strides = [1, 1]} : vector<16x128xf32> to vector<2x128xf32>
    %268 = arith.truncf %260 : vector<2x32xf32> to vector<2x32xbf16>
    %cst_110 = arith.constant dense<0.000000e+00> : vector<2x128xf32>
    %269 = tpu.matmul %268, %55, %cst_110 {dimension_numbers = #tpu.dot_dimension_numbers<[1], [0], [0], [1], [0, 0, 1, 1], [], []>} : vector<2x32xbf16>, vector<32x128xbf16>, vector<2x128xf32> -> vector<2x128xf32>
    %270 = arith.addf %267, %269 : vector<2x128xf32>
    %271 = arith.mulf %270, %66 : vector<2x128xf32>
    %272 = math.tanh %271 : vector<2x128xf32>
    %273 = vector.extract_strided_slice %272 {offsets = [0, 0], sizes = [2, 32], strides = [1, 1]} : vector<2x128xf32> to vector<2x32xf32>
    %cst_111 = arith.constant 1.000000e+00 : f32
    %274 = vector.broadcast %cst_111 : f32 to vector<2x32xf32>
    %275 = arith.addf %273, %274 : vector<2x32xf32>
    %cst_112 = arith.constant 5.000000e-01 : f32
    %276 = vector.broadcast %cst_112 : f32 to vector<2x32xf32>
    %277 = arith.mulf %276, %275 : vector<2x32xf32>
    %278 = vector.extract_strided_slice %272 {offsets = [0, 32], sizes = [2, 32], strides = [1, 1]} : vector<2x128xf32> to vector<2x32xf32>
    %cst_113 = arith.constant 1.000000e+00 : f32
    %279 = vector.broadcast %cst_113 : f32 to vector<2x32xf32>
    %280 = arith.addf %278, %279 : vector<2x32xf32>
    %cst_114 = arith.constant 5.000000e-01 : f32
    %281 = vector.broadcast %cst_114 : f32 to vector<2x32xf32>
    %282 = arith.mulf %281, %280 : vector<2x32xf32>
    %283 = vector.extract_strided_slice %272 {offsets = [0, 64], sizes = [2, 32], strides = [1, 1]} : vector<2x128xf32> to vector<2x32xf32>
    %284 = vector.extract_strided_slice %272 {offsets = [0, 96], sizes = [2, 32], strides = [1, 1]} : vector<2x128xf32> to vector<2x32xf32>
    %cst_115 = arith.constant 1.000000e+00 : f32
    %285 = vector.broadcast %cst_115 : f32 to vector<2x32xf32>
    %286 = arith.addf %284, %285 : vector<2x32xf32>
    %cst_116 = arith.constant 5.000000e-01 : f32
    %287 = vector.broadcast %cst_116 : f32 to vector<2x32xf32>
    %288 = arith.mulf %287, %286 : vector<2x32xf32>
    %289 = arith.mulf %282, %258 : vector<2x32xf32>
    %290 = arith.mulf %277, %283 : vector<2x32xf32>
    %291 = arith.addf %289, %290 : vector<2x32xf32>
    %292 = math.tanh %291 : vector<2x32xf32>
    %293 = arith.mulf %288, %292 : vector<2x32xf32>
    %294 = arith.truncf %293 : vector<2x32xf32> to vector<2x32xbf16>
    %cst_117 = arith.constant dense<0.000000e+00> : vector<2x32xf32>
    %295 = tpu.matmul %294, %56, %cst_117 {dimension_numbers = #tpu.dot_dimension_numbers<[1], [0], [0], [1], [0, 0, 1, 1], [], []>} : vector<2x32xbf16>, vector<32x32xbf16>, vector<2x32xf32> -> vector<2x32xf32>
    %296 = math.tanh %295 : vector<2x32xf32>
    %297 = arith.mulf %296, %59 : vector<2x32xf32>
    %cst_118 = arith.constant dense<0.000000e+00> : vector<2xf32>
    %298 = vector.multi_reduction <add>, %297, %cst_118 [1] : vector<2x32xf32> to vector<2xf32>
    %299 = vector.shape_cast %298 : vector<2xf32> to vector<2x1xf32>
    %300 = vector.extract_strided_slice %54 {offsets = [14, 0], sizes = [2, 128], strides = [1, 1]} : vector<16x128xf32> to vector<2x128xf32>
    %301 = arith.truncf %293 : vector<2x32xf32> to vector<2x32xbf16>
    %cst_119 = arith.constant dense<0.000000e+00> : vector<2x128xf32>
    %302 = tpu.matmul %301, %55, %cst_119 {dimension_numbers = #tpu.dot_dimension_numbers<[1], [0], [0], [1], [0, 0, 1, 1], [], []>} : vector<2x32xbf16>, vector<32x128xbf16>, vector<2x128xf32> -> vector<2x128xf32>
    %303 = arith.addf %300, %302 : vector<2x128xf32>
    %304 = arith.mulf %303, %66 : vector<2x128xf32>
    %305 = math.tanh %304 : vector<2x128xf32>
    %306 = vector.extract_strided_slice %305 {offsets = [0, 0], sizes = [2, 32], strides = [1, 1]} : vector<2x128xf32> to vector<2x32xf32>
    %cst_120 = arith.constant 1.000000e+00 : f32
    %307 = vector.broadcast %cst_120 : f32 to vector<2x32xf32>
    %308 = arith.addf %306, %307 : vector<2x32xf32>
    %cst_121 = arith.constant 5.000000e-01 : f32
    %309 = vector.broadcast %cst_121 : f32 to vector<2x32xf32>
    %310 = arith.mulf %309, %308 : vector<2x32xf32>
    %311 = vector.extract_strided_slice %305 {offsets = [0, 32], sizes = [2, 32], strides = [1, 1]} : vector<2x128xf32> to vector<2x32xf32>
    %cst_122 = arith.constant 1.000000e+00 : f32
    %312 = vector.broadcast %cst_122 : f32 to vector<2x32xf32>
    %313 = arith.addf %311, %312 : vector<2x32xf32>
    %cst_123 = arith.constant 5.000000e-01 : f32
    %314 = vector.broadcast %cst_123 : f32 to vector<2x32xf32>
    %315 = arith.mulf %314, %313 : vector<2x32xf32>
    %316 = vector.extract_strided_slice %305 {offsets = [0, 64], sizes = [2, 32], strides = [1, 1]} : vector<2x128xf32> to vector<2x32xf32>
    %317 = vector.extract_strided_slice %305 {offsets = [0, 96], sizes = [2, 32], strides = [1, 1]} : vector<2x128xf32> to vector<2x32xf32>
    %cst_124 = arith.constant 1.000000e+00 : f32
    %318 = vector.broadcast %cst_124 : f32 to vector<2x32xf32>
    %319 = arith.addf %317, %318 : vector<2x32xf32>
    %cst_125 = arith.constant 5.000000e-01 : f32
    %320 = vector.broadcast %cst_125 : f32 to vector<2x32xf32>
    %321 = arith.mulf %320, %319 : vector<2x32xf32>
    %322 = arith.mulf %315, %291 : vector<2x32xf32>
    %323 = arith.mulf %310, %316 : vector<2x32xf32>
    %324 = arith.addf %322, %323 : vector<2x32xf32>
    %325 = math.tanh %324 : vector<2x32xf32>
    %326 = arith.mulf %321, %325 : vector<2x32xf32>
    %327 = arith.truncf %326 : vector<2x32xf32> to vector<2x32xbf16>
    %cst_126 = arith.constant dense<0.000000e+00> : vector<2x32xf32>
    %328 = tpu.matmul %327, %56, %cst_126 {dimension_numbers = #tpu.dot_dimension_numbers<[1], [0], [0], [1], [0, 0, 1, 1], [], []>} : vector<2x32xbf16>, vector<32x32xbf16>, vector<2x32xf32> -> vector<2x32xf32>
    %329 = math.tanh %328 : vector<2x32xf32>
    %330 = arith.mulf %329, %59 : vector<2x32xf32>
    %cst_127 = arith.constant dense<0.000000e+00> : vector<2xf32>
    %331 = vector.multi_reduction <add>, %330, %cst_127 [1] : vector<2x32xf32> to vector<2xf32>
    %332 = vector.shape_cast %331 : vector<2xf32> to vector<2x1xf32>
    %333 = tpu.concatenate %101, %134, %167, %200, %233, %266, %299, %332 in 1 : vector<2x1xf32>, vector<2x1xf32>, vector<2x1xf32>, vector<2x1xf32>, vector<2x1xf32>, vector<2x1xf32>, vector<2x1xf32>, vector<2x1xf32> -> vector<2x8xf32>
    %cst_128 = arith.constant dense<0xFF800000> : vector<2xf32>
    %334 = vector.multi_reduction <maximumf>, %333, %cst_128 [1] : vector<2x8xf32> to vector<2xf32>
    %335 = vector.shape_cast %334 : vector<2xf32> to vector<2x1xf32>
    %336 = vector.broadcast %335 : vector<2x1xf32> to vector<2x8xf32>
    %337 = arith.subf %333, %336 : vector<2x8xf32>
    %338 = math.exp %337 : vector<2x8xf32>
    %cst_129 = arith.constant dense<0.000000e+00> : vector<2xf32>
    %339 = vector.multi_reduction <add>, %338, %cst_129 [1] : vector<2x8xf32> to vector<2xf32>
    %340 = vector.shape_cast %339 : vector<2xf32> to vector<2x1xf32>
    %341 = vector.broadcast %340 : vector<2x1xf32> to vector<2x8xf32>
    %342 = arith.divf %338, %341 : vector<2x8xf32>
    %343 = vector.extract_strided_slice %342 {offsets = [0, 0], sizes = [2, 1], strides = [1, 1]} : vector<2x8xf32> to vector<2x1xf32>
    %344 = vector.broadcast %343 : vector<2x1xf32> to vector<2x32xf32>
    %345 = arith.mulf %344, %95 : vector<2x32xf32>
    %346 = vector.extract_strided_slice %342 {offsets = [0, 1], sizes = [2, 1], strides = [1, 1]} : vector<2x8xf32> to vector<2x1xf32>
    %347 = vector.broadcast %346 : vector<2x1xf32> to vector<2x32xf32>
    %348 = arith.mulf %347, %128 : vector<2x32xf32>
    %349 = arith.addf %345, %348 : vector<2x32xf32>
    %350 = vector.extract_strided_slice %342 {offsets = [0, 2], sizes = [2, 1], strides = [1, 1]} : vector<2x8xf32> to vector<2x1xf32>
    %351 = vector.broadcast %350 : vector<2x1xf32> to vector<2x32xf32>
    %352 = arith.mulf %351, %161 : vector<2x32xf32>
    %353 = arith.addf %349, %352 : vector<2x32xf32>
    %354 = vector.extract_strided_slice %342 {offsets = [0, 3], sizes = [2, 1], strides = [1, 1]} : vector<2x8xf32> to vector<2x1xf32>
    %355 = vector.broadcast %354 : vector<2x1xf32> to vector<2x32xf32>
    %356 = arith.mulf %355, %194 : vector<2x32xf32>
    %357 = arith.addf %353, %356 : vector<2x32xf32>
    %358 = vector.extract_strided_slice %342 {offsets = [0, 4], sizes = [2, 1], strides = [1, 1]} : vector<2x8xf32> to vector<2x1xf32>
    %359 = vector.broadcast %358 : vector<2x1xf32> to vector<2x32xf32>
    %360 = arith.mulf %359, %227 : vector<2x32xf32>
    %361 = arith.addf %357, %360 : vector<2x32xf32>
    %362 = vector.extract_strided_slice %342 {offsets = [0, 5], sizes = [2, 1], strides = [1, 1]} : vector<2x8xf32> to vector<2x1xf32>
    %363 = vector.broadcast %362 : vector<2x1xf32> to vector<2x32xf32>
    %364 = arith.mulf %363, %260 : vector<2x32xf32>
    %365 = arith.addf %361, %364 : vector<2x32xf32>
    %366 = vector.extract_strided_slice %342 {offsets = [0, 6], sizes = [2, 1], strides = [1, 1]} : vector<2x8xf32> to vector<2x1xf32>
    %367 = vector.broadcast %366 : vector<2x1xf32> to vector<2x32xf32>
    %368 = arith.mulf %367, %293 : vector<2x32xf32>
    %369 = arith.addf %365, %368 : vector<2x32xf32>
    %370 = vector.extract_strided_slice %342 {offsets = [0, 7], sizes = [2, 1], strides = [1, 1]} : vector<2x8xf32> to vector<2x1xf32>
    %371 = vector.broadcast %370 : vector<2x1xf32> to vector<2x32xf32>
    %372 = arith.mulf %371, %326 : vector<2x32xf32>
    %373 = arith.addf %369, %372 : vector<2x32xf32>
    %374 = tpu.concatenate %373, %326 in 1 : vector<2x32xf32>, vector<2x32xf32> -> vector<2x64xf32>
    %375 = arith.truncf %374 : vector<2x64xf32> to vector<2x64xbf16>
    %c0_130 = arith.constant 0 : index
    %c0_131 = arith.constant 0 : index
    %376 = vector.load %arg7[%c0_130, %c0_131] : memref<64x32xbf16, #tpu.memory_space<vmem>>, vector<64x32xbf16>
    %cst_132 = arith.constant dense<0.000000e+00> : vector<2x32xf32>
    %377 = tpu.matmul %375, %376, %cst_132 {dimension_numbers = #tpu.dot_dimension_numbers<[1], [0], [0], [1], [0, 0, 1, 1], [], []>} : vector<2x64xbf16>, vector<64x32xbf16>, vector<2x32xf32> -> vector<2x32xf32>
    %378 = math.tanh %377 : vector<2x32xf32>
    %379 = arith.truncf %378 : vector<2x32xf32> to vector<2x32xbf16>
    %c0_133 = arith.constant 0 : index
    %c0_134 = arith.constant 0 : index
    %380 = vector.load %arg8[%c0_133, %c0_134] : memref<32x4xbf16, #tpu.memory_space<vmem>>, vector<32x4xbf16>
    %cst_135 = arith.constant dense<0.000000e+00> : vector<2x4xf32>
    %381 = tpu.matmul %379, %380, %cst_135 {dimension_numbers = #tpu.dot_dimension_numbers<[1], [0], [0], [1], [0, 0, 1, 1], [], []>} : vector<2x32xbf16>, vector<32x4xbf16>, vector<2x4xf32> -> vector<2x4xf32>
    %c0_136 = arith.constant 0 : index
    %c0_137 = arith.constant 0 : index
    %382 = vector.load %arg9[%c0_136, %c0_137] : memref<1x4xf32, #tpu.memory_space<vmem>>, vector<1x4xf32>
    %383 = vector.broadcast %382 : vector<1x4xf32> to vector<2x4xf32>
    %384 = arith.addf %381, %383 : vector<2x4xf32>
    %c0_138 = arith.constant 0 : index
    %c0_139 = arith.constant 0 : index
    %385 = vector.load %arg10[%c0_138, %c0_139] : memref<2x4xf32, #tpu.memory_space<vmem>>, vector<2x4xf32>
    tpu.vector_store %arg10[%c0_138, %c0_139], %384 {strides = array<i32>} : memref<2x4xf32, #tpu.memory_space<vmem>>, vector<2x4xf32>,
    return
  }
}

</mosaic_0001>

<llo_original>
// kernel: ae_lstm_forward.1
$region0: #{ae_lstm_forward.1}
  #allocation0 [shape = 'u32[]', space=smem, size = 0x4, offset = 0x4, fixed_abs, tag = 'smem constant byte address 0x4 - core index']
  #allocation1 [shape = 'u32[144,128]{1,0:T(1,128)}', space=vmem, size = 0x12000, scoped, tag = 'internal scratch']
  %s0 = inlined_call_operand.vmem [shape: s32[2,8], index: 0, kind: input, shape index: {}]
  %s1 = inlined_call_operand.vmem [shape: f32[50,32], index: 1, kind: input, shape index: {}]
  %s2 = inlined_call_operand.vmem [shape: bf16[32,128], index: 2, kind: input, shape index: {}]
  %s3 = inlined_call_operand.vmem [shape: bf16[32,128], index: 3, kind: input, shape index: {}]
  %s4 = inlined_call_operand.vmem [shape: f32[1,128], index: 4, kind: input, shape index: {}]
  %s5 = inlined_call_operand.vmem [shape: bf16[32,32], index: 5, kind: input, shape index: {}]
  %s6 = inlined_call_operand.vmem [shape: f32[1,32], index: 6, kind: input, shape index: {}]
  %s7 = inlined_call_operand.vmem [shape: bf16[64,32], index: 7, kind: input, shape index: {}]
  %s8 = inlined_call_operand.vmem [shape: bf16[32,4], index: 8, kind: input, shape index: {}]
  %s9 = inlined_call_operand.vmem [shape: f32[1,4], index: 9, kind: input, shape index: {}]
  %s10 = inlined_call_operand.hbm [shape: f32[2,4], index: 10, kind: output, shape index: {}]
  %s11 = sld [smem:[#allocation0]]
  $region54: #{ae_lstm_forward.1} parent=0
    _
  %s13 = ssub.s32 1, %s11
  %s14 = scalar_select 0, %s13, %s11
  $region1: #{ae_lstm_forward.1} parent=0
    #allocation2 [shape = 'u8[1024]{0}', space=smem, size = 0x400, scoped, tag = 'input window, operand 0, single buffered']
    #allocation3 [shape = 's32[1]{0}', space=sflag, size = 0x4, scoped, tag = 'scoped memory for ae_lstm_forward.1']
    #allocation4 [shape = 's32[1]{0}', space=sflag, size = 0x4, scoped, tag = 'scoped memory for ae_lstm_forward.1']
    #allocation5 [shape = 'u8[1024]{0}', space=vmem, size = 0x400, scoped, tag = 'output window, operand 0, single buffered']
    %15 = vsyncpa [#allocation4], 0
    %16 = vsyncpa [#allocation3], 0
    // Predicated region
    $region2: #{ae_lstm_forward.1} parent=1 // pred_check
      _
    $region3: #{ae_lstm_forward.1} parent=1 // pred_check_branch
      %18 = sbr.rel (0) target = $region5
    $region4: #{ae_lstm_forward.1} parent=1 // pred_region
      %s20 = ssub.s32 32, 32
      %21 = vsyncadd [#allocation4], %s20
      %s23 = sshll.u32 %s0, 4
      %s24 = int_to_ptr.vmem [resolvable:$true] %s23
      %26 = dma.vmem_to_smem %s24, 32, [#allocation2], [#allocation4]
    $region5: #{ae_lstm_forward.1} parent=1 // pred_fallthru
      _
    // Predicated region
    $region6: #{ae_lstm_forward.1} parent=1 // pred_check
      _
    $region7: #{ae_lstm_forward.1} parent=1 // pred_check_branch
      %28 = sbr.rel (0) target = $region9
    $region8: #{ae_lstm_forward.1} parent=1 // pred_region
      _
    $region9: #{ae_lstm_forward.1} parent=1 // pred_fallthru
      _
    // Predicated region
    $region10: #{ae_lstm_forward.1} parent=1 // pred_check
      _
    $region11: #{ae_lstm_forward.1} parent=1 // pred_check_branch
      %30 = sbr.rel (0) target = $region13
    $region12: #{ae_lstm_forward.1} parent=1 // pred_region
      _
    $region13: #{ae_lstm_forward.1} parent=1 // pred_fallthru
      _
    // Predicated region
    $region14: #{ae_lstm_forward.1} parent=1 // pred_check
      _
    $region15: #{ae_lstm_forward.1} parent=1 // pred_check_branch
      %32 = sbr.rel (0) target = $region17
    $region16: #{ae_lstm_forward.1} parent=1 // pred_region
      _
    $region17: #{ae_lstm_forward.1} parent=1 // pred_fallthru
      _
    // Predicated region
    $region18: #{ae_lstm_forward.1} parent=1 // pred_check
      _
    $region19: #{ae_lstm_forward.1} parent=1 // pred_check_branch
      %34 = sbr.rel (0) target = $region21
    $region20: #{ae_lstm_forward.1} parent=1 // pred_region
      _
    $region21: #{ae_lstm_forward.1} parent=1 // pred_fallthru
      _
    // Predicated region
    $region22: #{ae_lstm_forward.1} parent=1 // pred_check
      _
    $region23: #{ae_lstm_forward.1} parent=1 // pred_check_branch
      %36 = sbr.rel (0) target = $region25
    $region24: #{ae_lstm_forward.1} parent=1 // pred_region
      _
    $region25: #{ae_lstm_forward.1} parent=1 // pred_fallthru
      _
    // Predicated region
    $region26: #{ae_lstm_forward.1} parent=1 // pred_check
      _
    $region27: #{ae_lstm_forward.1} parent=1 // pred_check_branch
      %38 = sbr.rel (0) target = $region29
    $region28: #{ae_lstm_forward.1} parent=1 // pred_region
      _
    $region29: #{ae_lstm_forward.1} parent=1 // pred_fallthru
      _
    // Predicated region
    $region30: #{ae_lstm_forward.1} parent=1 // pred_check
      _
    $region31: #{ae_lstm_forward.1} parent=1 // pred_check_branch
      %40 = sbr.rel (0) target = $region33
    $region32: #{ae_lstm_forward.1} parent=1 // pred_region
      _
    $region33: #{ae_lstm_forward.1} parent=1 // pred_fallthru
      _
    // Predicated region
    $region34: #{ae_lstm_forward.1} parent=1 // pred_check
      _
    $region35: #{ae_lstm_forward.1} parent=1 // pred_check_branch
      %42 = sbr.rel (0) target = $region37
    $region36: #{ae_lstm_forward.1} parent=1 // pred_region
      _
    $region37: #{ae_lstm_forward.1} parent=1 // pred_fallthru
      _
    // Predicated region
    $region38: #{ae_lstm_forward.1} parent=1 // pred_check
      _
    $region39: #{ae_lstm_forward.1} parent=1 // pred_check_branch
      %44 = sbr.rel (0) target = $region41
    $region40: #{ae_lstm_forward.1} parent=1 // pred_region
      _
    $region41: #{ae_lstm_forward.1} parent=1 // pred_fallthru
      _
    // Predicated region
    $region42: #{ae_lstm_forward.1} parent=1 // pred_check
      _
    $region43: #{ae_lstm_forward.1} parent=1 // pred_check_branch
      %46 = sbr.rel (0) target = $region45
    $region44: #{ae_lstm_forward.1} parent=1 // pred_region
      %47 = dma.done [#allocation4], 32
    $region45: #{ae_lstm_forward.1} parent=1 // pred_fallthru
      _
    %48 = sfence
    %s50 = sld [smem:[#allocation2]]
    %s51 = scalar_lea.vmem %s1, %s50
    %v52 = vld [vmem:[%s51] sm:$0x1]
    %s53 = sld [smem:[#allocation2 + $0x80]]
    %s54 = scalar_lea.vmem %s1, %s53
    %v55 = vld [vmem:[%s54] sm:$0x1]
    %s56 = sld [smem:[#allocation2 + $0x1]]
    %s57 = scalar_lea.vmem %s1, %s56
    %v58 = vld [vmem:[%s57] sm:$0x1]
    %s59 = sld [smem:[#allocation2 + $0x81]]
    %s60 = scalar_lea.vmem %s1, %s59
    %v61 = vld [vmem:[%s60] sm:$0x1]
    %s62 = sld [smem:[#allocation2 + $0x2]]
    %s63 = scalar_lea.vmem %s1, %s62
    %v64 = vld [vmem:[%s63] sm:$0x1]
    %s65 = sld [smem:[#allocation2 + $0x82]]
    %s66 = scalar_lea.vmem %s1, %s65
    %v67 = vld [vmem:[%s66] sm:$0x1]
    %s68 = sld [smem:[#allocation2 + $0x3]]
    %s69 = scalar_lea.vmem %s1, %s68
    %v70 = vld [vmem:[%s69] sm:$0x1]
    %s71 = sld [smem:[#allocation2 + $0x83]]
    %s72 = scalar_lea.vmem %s1, %s71
    %v73 = vld [vmem:[%s72] sm:$0x1]
    %s74 = sld [smem:[#allocation2 + $0x4]]
    %s75 = scalar_lea.vmem %s1, %s74
    %v76 = vld [vmem:[%s75] sm:$0x1]
    %s77 = sld [smem:[#allocation2 + $0x84]]
    %s78 = scalar_lea.vmem %s1, %s77
    %v79 = vld [vmem:[%s78] sm:$0x1]
    %s80 = sld [smem:[#allocation2 + $0x5]]
    %s81 = scalar_lea.vmem %s1, %s80
    %v82 = vld [vmem:[%s81] sm:$0x1]
    %s83 = sld [smem:[#allocation2 + $0x85]]
    %s84 = scalar_lea.vmem %s1, %s83
    %v85 = vld [vmem:[%s84] sm:$0x1]
    %s86 = sld [smem:[#allocation2 + $0x6]]
    %s87 = scalar_lea.vmem %s1, %s86
    %v88 = vld [vmem:[%s87] sm:$0x1]
    %s89 = sld [smem:[#allocation2 + $0x86]]
    %s90 = scalar_lea.vmem %s1, %s89
    %v91 = vld [vmem:[%s90] sm:$0x1]
    %s92 = sld [smem:[#allocation2 + $0x7]]
    %s93 = scalar_lea.vmem %s1, %s92
    %v94 = vld [vmem:[%s93] sm:$0x1]
    %s95 = sld [smem:[#allocation2 + $0x87]]
    %s96 = scalar_lea.vmem %s1, %s95
    %v97 = vld [vmem:[%s96] sm:$0x1]
    %v99 = vrot.slane %v55, 7
    %v102 = vrot.slane %v58, 6
    %v105 = vrot.slane %v61, 5
    %v108 = vrot.slane %v64, 4
    %v111 = vrot.slane %v67, 3
    %v114 = vrot.slane %v70, 2
    %v117 = vrot.slane %v73, 1
    %v120 = vrot.slane %v79, 7
    %v123 = vrot.slane %v82, 6
    %v126 = vrot.slane %v85, 5
    %v129 = vrot.slane %v88, 4
    %v132 = vrot.slane %v91, 3
    %v135 = vrot.slane %v94, 2
    %v138 = vrot.slane %v97, 1
    %vm140 = vcmask 1040384
    %v141 = vsel %vm140, %v52, %v99
    %vm142 = vcmask 1041408
    %v143 = vsel %vm142, %v141, %v102
    %vm144 = vcmask 1042432
    %v145 = vsel %vm144, %v143, %v105
    %vm146 = vcmask 1043456
    %v147 = vsel %vm146, %v145, %v108
    %vm148 = vcmask 1044480
    %v149 = vsel %vm148, %v147, %v111
    %vm150 = vcmask 1045504
    %v151 = vsel %vm150, %v149, %v114
    %vm152 = vcmask 1046528
    %v153 = vsel %vm152, %v151, %v117
    %v154 = vsel %vm140, %v76, %v120
    %v155 = vsel %vm142, %v154, %v123
    %v156 = vsel %vm144, %v155, %v126
    %v157 = vsel %vm146, %v156, %v129
    %v158 = vsel %vm148, %v157, %v132
    %v159 = vsel %vm150, %v158, %v135
    %v160 = vsel %vm152, %v159, %v138
    %v161 = vpack.c.bf16 %v160, %v153
    %v162 = vld [vmem:[%s2] sm:$0xf]
    %v163 = vld [vmem:[%s2 + $0x4] sm:$0xf]
    %v164 = vld [vmem:[%s2 + $0x8] sm:$0xf]
    %v165 = vld [vmem:[%s2 + $0xc] sm:$0xf]
    %v166 = vld [vmem:[%s4] sm:$0x1]
    %v168 = vlaneseq
    %v169 = vshrl.u32 %v168, 7
    %v170 = vsub.s32 0, %v169
    %v171 = vrot.slane %v166, %v170
    %v177 = vunpack.c.l.b16 %v162
    %v178 = vunpack.c.l.b16 %v163
    %v179 = vunpack.c.l.b16 %v164
    %v180 = vunpack.c.l.b16 %v165
    %v181 = vpack.c.b16 %v178, %v177
    %v182 = vpack.c.b16 %v180, %v179
    %vm185 = vcmask 261120
    %v187 = vsel %vm185, %v161, 0
    %189 = vmatprep.subr.bf16.mxu0 0
    %190 = vmatpush1.bf16.msra.mxu0 0
    %191 = vmatprep.subr.bf16.mxu0 0
    %192 = vmatpush1.bf16.msra.mxu0 0
    %193 = vmatprep.subr.bf16.mxu0 0
    %194 = vmatpush1.bf16.msra.mxu0 0
    %195 = vmatprep.subr.bf16.mxu0 0
    %196 = vmatpush1.bf16.msra.mxu0 0
    %197 = vmatprep.subr.bf16.mxu0 0
    %198 = vmatpush1.bf16.msra.mxu0 0
    %199 = vmatprep.subr.bf16.mxu0 0
    %200 = vmatpush1.bf16.msra.mxu0 0
    %201 = vmatprep.subr.bf16.mxu0 0
    %202 = vmatpush1.bf16.msra.mxu0 %v182
    %203 = vmatprep.subr.bf16.mxu0 0
    %204 = vmatpush1.bf16.msra.mxu0 %v181
    %205 = vmatprep.subr.bf16.mxu0 0
    %206 = vmatpush2.bf16.msra.mxu0 0
    %207 = vmatprep.subr.bf16.mxu0 0
    %208 = vmatpush2.bf16.msra.mxu0 0
    %209 = vmatprep.subr.bf16.mxu0 0
    %210 = vmatpush2.bf16.msra.mxu0 0
    %211 = vmatprep.subr.bf16.mxu0 0
    %212 = vmatpush2.bf16.msra.mxu0 0
    %213 = vmatprep.subr.bf16.mxu0 0
    %214 = vmatpush2.bf16.msra.mxu0 0
    %215 = vmatprep.subr.bf16.mxu0 0
    %216 = vmatpush2.bf16.msra.mxu0 0
    %217 = vmatprep.subr.bf16.mxu0 0
    %218 = vmatpush2.bf16.msra.mxu0 0
    %219 = vmatprep.subr.bf16.mxu0 0
    %220 = vmatpush2.bf16.msra.mxu0 0
    %221 = vmatprep.mubr.bf16.mxu0 0
    %222 = vmatmul.mubr.bf16.gmra.mxu0 %v187
    %v223 = vpop.f32.mrf.mxu0
    %v224 = vadd.f32 %v171, %v223
    %v225 = vpop.f32.mrf.mxu0
    %v226 = vpop.f32.mrf.mxu0
    %v227 = vadd.f32 %v171, %v226
    %v228 = vpop.f32.mrf.mxu0
    %229 = vdwg.mxu0
    %v230 = vld [vmem:[%s3] sm:$0xf]
    %v231 = vld [vmem:[%s3 + $0x4] sm:$0xf]
    %v232 = vld [vmem:[%s3 + $0x8] sm:$0xf]
    %v233 = vld [vmem:[%s3 + $0xc] sm:$0xf]
    %v234 = vld [vmem:[%s5] sm:$0xf]
    %v235 = vld [vmem:[%s5 + $0x4] sm:$0xf]
    %v236 = vld [vmem:[%s5 + $0x8] sm:$0xf]
    %v237 = vld [vmem:[%s5 + $0xc] sm:$0xf]
    %v238 = vld [vmem:[%s6] sm:$0x1]
    %v240 = vlaneseq
    %v241 = vshrl.u32 %v240, 7
    %v242 = vsub.s32 0, %v241
    %v243 = vrot.slane %v238, %v242
    %vm245 = vcmask 523264
    %v246 = vsel %vm245, 0.5, 1.0
    %vm247 = vcmask 785408
    %v248 = vsel %vm247, %v246, 0.5
    %v249 = vlaneseq
    %v250 = vshrl.u32 %v249, 7
    %v251 = vsub.s32 0, %v250
    %v252 = vrot.slane %v248, %v251
    %v257 = vunpack.c.l.b16 %v230
    %v258 = vunpack.c.l.b16 %v231
    %v259 = vunpack.c.l.b16 %v232
    %v260 = vunpack.c.l.b16 %v233
    %v261 = vpack.c.b16 %v258, %v257
    %v262 = vpack.c.b16 %v260, %v259
    %v266 = vsel %vm185, 0, 0
    %268 = vmatprep.subr.bf16.mxu0 0
    %269 = vmatpush1.bf16.msra.mxu0 0
    %270 = vmatprep.subr.bf16.mxu0 0
    %271 = vmatpush1.bf16.msra.mxu0 0
    %272 = vmatprep.subr.bf16.mxu0 0
    %273 = vmatpush1.bf16.msra.mxu0 0
    %274 = vmatprep.subr.bf16.mxu0 0
    %275 = vmatpush1.bf16.msra.mxu0 0
    %276 = vmatprep.subr.bf16.mxu0 0
    %277 = vmatpush1.bf16.msra.mxu0 0
    %278 = vmatprep.subr.bf16.mxu0 0
    %279 = vmatpush1.bf16.msra.mxu0 0
    %280 = vmatprep.subr.bf16.mxu0 0
    %281 = vmatpush1.bf16.msra.mxu0 %v262
    %282 = vmatprep.subr.bf16.mxu0 0
    %283 = vmatpush1.bf16.msra.mxu0 %v261
    %284 = vmatprep.subr.bf16.mxu0 0
    %285 = vmatpush2.bf16.msra.mxu0 0
    %286 = vmatprep.subr.bf16.mxu0 0
    %287 = vmatpush2.bf16.msra.mxu0 0
    %288 = vmatprep.subr.bf16.mxu0 0
    %289 = vmatpush2.bf16.msra.mxu0 0
    %290 = vmatprep.subr.bf16.mxu0 0
    %291 = vmatpush2.bf16.msra.mxu0 0
    %292 = vmatprep.subr.bf16.mxu0 0
    %293 = vmatpush2.bf16.msra.mxu0 0
    %294 = vmatprep.subr.bf16.mxu0 0
    %295 = vmatpush2.bf16.msra.mxu0 0
    %296 = vmatprep.subr.bf16.mxu0 0
    %297 = vmatpush2.bf16.msra.mxu0 0
    %298 = vmatprep.subr.bf16.mxu0 0
    %299 = vmatpush2.bf16.msra.mxu0 0
    %300 = vmatprep.mubr.bf16.mxu0 0
    %301 = vmatmul.mubr.bf16.gmra.mxu0 %v266
    %v302 = vpop.f32.mrf.mxu0
    %v303 = vadd.f32 0.0, %v302
    %v304 = vpop.f32.mrf.mxu0
    %v305 = vpop.f32.mrf.mxu0
    %v306 = vpop.f32.mrf.mxu0
    %307 = vdwg.mxu0
    %v308 = vadd.f32 %v224, %v303
    %v309 = vmul.f32 %v308, %v252
    %v310 = vtanh.pop %v309
    %v311 = vadd.f32 %v310, 1.0
    %v312 = vmul.f32 %v311, 0.5
    %v313 = vmul.f32 %v312, 0.0
    %315 = vrot.lane.b32.xlu0 %v310, 64
    %v316 = vpop.permute.xlu0 %315
    %v318 = vmul.f32 %v312, %v316
    %320 = vrot.lane.b32.xlu0 %v318, 32
    %v321 = vpop.permute.xlu0 %320
    %v323 = vadd.f32 %v313, %v321
    %v324 = vtanh.pop %v323
    %326 = vrot.lane.b32.xlu0 %v324, 64
    %v327 = vpop.permute.xlu0 %326
    %v329 = vmul.f32 %v312, %v327
    %v330 = vpack.c.bf16 %v329, %v329
    %332 = vrot.lane.b32.xlu0 %v330, 32
    %v333 = vpop.permute.xlu0 %332
    %v338 = vunpack.c.l.b16 %v234
    %v339 = vunpack.c.l.b16 %v235
    %v340 = vunpack.c.l.b16 %v236
    %v341 = vunpack.c.l.b16 %v237
    %v342 = vpack.c.b16 %v339, %v338
    %v343 = vpack.c.b16 %v341, %v340
    %v347 = vsel %vm185, %v333, 0
    %349 = vmatprep.subr.bf16.mxu0 0
    %350 = vmatpush1.bf16.msra.mxu0 0
    %351 = vmatprep.subr.bf16.mxu0 0
    %352 = vmatpush1.bf16.msra.mxu0 0
    %353 = vmatprep.subr.bf16.mxu0 0
    %354 = vmatpush1.bf16.msra.mxu0 0
    %355 = vmatprep.subr.bf16.mxu0 0
    %356 = vmatpush1.bf16.msra.mxu0 0
    %357 = vmatprep.subr.bf16.mxu0 0
    %358 = vmatpush1.bf16.msra.mxu0 0
    %359 = vmatprep.subr.bf16.mxu0 0
    %360 = vmatpush1.bf16.msra.mxu0 0
    %361 = vmatprep.subr.bf16.mxu0 0
    %362 = vmatpush1.bf16.msra.mxu0 %v343
    %363 = vmatprep.subr.bf16.mxu0 0
    %364 = vmatpush1.bf16.msra.mxu0 %v342
    %365 = vmatprep.subr.bf16.mxu0 0
    %366 = vmatpush2.bf16.msra.mxu0 0
    %367 = vmatprep.subr.bf16.mxu0 0
    %368 = vmatpush2.bf16.msra.mxu0 0
    %369 = vmatprep.subr.bf16.mxu0 0
    %370 = vmatpush2.bf16.msra.mxu0 0
    %371 = vmatprep.subr.bf16.mxu0 0
    %372 = vmatpush2.bf16.msra.mxu0 0
    %373 = vmatprep.subr.bf16.mxu0 0
    %374 = vmatpush2.bf16.msra.mxu0 0
    %375 = vmatprep.subr.bf16.mxu0 0
    %376 = vmatpush2.bf16.msra.mxu0 0
    %377 = vmatprep.subr.bf16.mxu0 0
    %378 = vmatpush2.bf16.msra.mxu0 0
    %379 = vmatprep.subr.bf16.mxu0 0
    %380 = vmatpush2.bf16.msra.mxu0 0
    %381 = vmatprep.mubr.bf16.mxu0 0
    %382 = vmatmul.mubr.bf16.gmra.mxu0 %v347
    %v383 = vpop.f32.mrf.mxu0
    %v384 = vadd.f32 0.0, %v383
    %v385 = vpop.f32.mrf.mxu0
    %v386 = vpop.f32.mrf.mxu0
    %v387 = vpop.f32.mrf.mxu0
    %388 = vdwg.mxu0
    %v389 = vtanh.pop %v384
    %v390 = vmul.f32 %v389, %v243
    %vm391 = vcmask 254976
    %v392 = vsel %vm391, %v390, 0.0
    %393 = vadd.xlane.f32.xlu0 %v392
    %v394 = vpop.xlane.xlu0 %393
    %395 = vmatprep.subr.bf16.mxu0 0
    %396 = vmatpush1.bf16.msra.mxu0 0
    %397 = vmatprep.subr.bf16.mxu0 0
    %398 = vmatpush1.bf16.msra.mxu0 0
    %399 = vmatprep.subr.bf16.mxu0 0
    %400 = vmatpush1.bf16.msra.mxu0 0
    %401 = vmatprep.subr.bf16.mxu0 0
    %402 = vmatpush1.bf16.msra.mxu0 0
    %403 = vmatprep.subr.bf16.mxu0 0
    %404 = vmatpush1.bf16.msra.mxu0 0
    %405 = vmatprep.subr.bf16.mxu0 0
    %406 = vmatpush1.bf16.msra.mxu0 0
    %407 = vmatprep.subr.bf16.mxu0 0
    %408 = vmatpush1.bf16.msra.mxu0 %v262
    %409 = vmatprep.subr.bf16.mxu0 0
    %410 = vmatpush1.bf16.msra.mxu0 %v261
    %411 = vmatprep.subr.bf16.mxu0 0
    %412 = vmatpush2.bf16.msra.mxu0 0
    %413 = vmatprep.subr.bf16.mxu0 0
    %414 = vmatpush2.bf16.msra.mxu0 0
    %415 = vmatprep.subr.bf16.mxu0 0
    %416 = vmatpush2.bf16.msra.mxu0 0
    %417 = vmatprep.subr.bf16.mxu0 0
    %418 = vmatpush2.bf16.msra.mxu0 0
    %419 = vmatprep.subr.bf16.mxu0 0
    %420 = vmatpush2.bf16.msra.mxu0 0
    %421 = vmatprep.subr.bf16.mxu0 0
    %422 = vmatpush2.bf16.msra.mxu0 0
    %423 = vmatprep.subr.bf16.mxu0 0
    %424 = vmatpush2.bf16.msra.mxu0 0
    %425 = vmatprep.subr.bf16.mxu0 0
    %426 = vmatpush2.bf16.msra.mxu0 0
    %427 = vmatprep.mubr.bf16.mxu0 0
    %428 = vmatmul.mubr.bf16.gmra.mxu0 %v347
    %v429 = vpop.f32.mrf.mxu0
    %v430 = vadd.f32 0.0, %v429
    %v431 = vpop.f32.mrf.mxu0
    %v432 = vpop.f32.mrf.mxu0
    %v433 = vpop.f32.mrf.mxu0
    %434 = vdwg.mxu0
    %v436 = vrot.slane %v430, 6
    %v438 = vadd.f32 %v224, %v436
    %v439 = vmul.f32 %v438, %v252
    %v440 = vtanh.pop %v439
    %v441 = vadd.f32 %v440, 1.0
    %v442 = vmul.f32 %v441, 0.5
    %v444 = vrot.slane %v323, 6
    %v446 = vmul.f32 %v442, %v444
    %448 = vrot.lane.b32.xlu0 %v440, 64
    %v449 = vpop.permute.xlu0 %448
    %v451 = vmul.f32 %v442, %v449
    %453 = vrot.lane.b32.xlu0 %v451, 32
    %v454 = vpop.permute.xlu0 %453
    %v456 = vadd.f32 %v446, %v454
    %v457 = vtanh.pop %v456
    %459 = vrot.lane.b32.xlu0 %v457, 64
    %v460 = vpop.permute.xlu0 %459
    %v462 = vmul.f32 %v442, %v460
    %v463 = vpack.c.bf16 %v462, %v462
    %v465 = vrot.slane %v463, 1
    %466 = vrot.lane.b32.xlu0 %v465, 32
    %v467 = vpop.permute.xlu0 %466
    %v469 = vsel %vm185, %v467, 0
    %471 = vmatprep.subr.bf16.mxu0 0
    %472 = vmatpush1.bf16.msra.mxu0 0
    %473 = vmatprep.subr.bf16.mxu0 0
    %474 = vmatpush1.bf16.msra.mxu0 0
    %475 = vmatprep.subr.bf16.mxu0 0
    %476 = vmatpush1.bf16.msra.mxu0 0
    %477 = vmatprep.subr.bf16.mxu0 0
    %478 = vmatpush1.bf16.msra.mxu0 0
    %479 = vmatprep.subr.bf16.mxu0 0
    %480 = vmatpush1.bf16.msra.mxu0 0
    %481 = vmatprep.subr.bf16.mxu0 0
    %482 = vmatpush1.bf16.msra.mxu0 0
    %483 = vmatprep.subr.bf16.mxu0 0
    %484 = vmatpush1.bf16.msra.mxu0 %v343
    %485 = vmatprep.subr.bf16.mxu0 0
    %486 = vmatpush1.bf16.msra.mxu0 %v342
    %487 = vmatprep.subr.bf16.mxu0 0
    %488 = vmatpush2.bf16.msra.mxu0 0
    %489 = vmatprep.subr.bf16.mxu0 0
    %490 = vmatpush2.bf16.msra.mxu0 0
    %491 = vmatprep.subr.bf16.mxu0 0
    %492 = vmatpush2.bf16.msra.mxu0 0
    %493 = vmatprep.subr.bf16.mxu0 0
    %494 = vmatpush2.bf16.msra.mxu0 0
    %495 = vmatprep.subr.bf16.mxu0 0
    %496 = vmatpush2.bf16.msra.mxu0 0
    %497 = vmatprep.subr.bf16.mxu0 0
    %498 = vmatpush2.bf16.msra.mxu0 0
    %499 = vmatprep.subr.bf16.mxu0 0
    %500 = vmatpush2.bf16.msra.mxu0 0
    %501 = vmatprep.subr.bf16.mxu0 0
    %502 = vmatpush2.bf16.msra.mxu0 0
    %503 = vmatprep.mubr.bf16.mxu0 0
    %504 = vmatmul.mubr.bf16.gmra.mxu0 %v469
    %v505 = vpop.f32.mrf.mxu0
    %v506 = vadd.f32 0.0, %v505
    %v507 = vpop.f32.mrf.mxu0
    %v508 = vpop.f32.mrf.mxu0
    %v509 = vpop.f32.mrf.mxu0
    %510 = vdwg.mxu0
    %v511 = vtanh.pop %v506
    %v512 = vmul.f32 %v511, %v243
    %v513 = vsel %vm391, %v512, 0.0
    %514 = vadd.xlane.f32.xlu0 %v513
    %v515 = vpop.xlane.xlu0 %514
    %516 = vmatprep.subr.bf16.mxu0 0
    %517 = vmatpush1.bf16.msra.mxu0 0
    %518 = vmatprep.subr.bf16.mxu0 0
    %519 = vmatpush1.bf16.msra.mxu0 0
    %520 = vmatprep.subr.bf16.mxu0 0
    %521 = vmatpush1.bf16.msra.mxu0 0
    %522 = vmatprep.subr.bf16.mxu0 0
    %523 = vmatpush1.bf16.msra.mxu0 0
    %524 = vmatprep.subr.bf16.mxu0 0
    %525 = vmatpush1.bf16.msra.mxu0 0
    %526 = vmatprep.subr.bf16.mxu0 0
    %527 = vmatpush1.bf16.msra.mxu0 0
    %528 = vmatprep.subr.bf16.mxu0 0
    %529 = vmatpush1.bf16.msra.mxu0 %v262
    %530 = vmatprep.subr.bf16.mxu0 0
    %531 = vmatpush1.bf16.msra.mxu0 %v261
    %532 = vmatprep.subr.bf16.mxu0 0
    %533 = vmatpush2.bf16.msra.mxu0 0
    %534 = vmatprep.subr.bf16.mxu0 0
    %535 = vmatpush2.bf16.msra.mxu0 0
    %536 = vmatprep.subr.bf16.mxu0 0
    %537 = vmatpush2.bf16.msra.mxu0 0
    %538 = vmatprep.subr.bf16.mxu0 0
    %539 = vmatpush2.bf16.msra.mxu0 0
    %540 = vmatprep.subr.bf16.mxu0 0
    %541 = vmatpush2.bf16.msra.mxu0 0
    %542 = vmatprep.subr.bf16.mxu0 0
    %543 = vmatpush2.bf16.msra.mxu0 0
    %544 = vmatprep.subr.bf16.mxu0 0
    %545 = vmatpush2.bf16.msra.mxu0 0
    %546 = vmatprep.subr.bf16.mxu0 0
    %547 = vmatpush2.bf16.msra.mxu0 0
    %548 = vmatprep.mubr.bf16.mxu0 0
    %549 = vmatmul.mubr.bf16.gmra.mxu0 %v469
    %v550 = vpop.f32.mrf.mxu0
    %v551 = vadd.f32 0.0, %v550
    %v552 = vpop.f32.mrf.mxu0
    %v553 = vpop.f32.mrf.mxu0
    %v554 = vpop.f32.mrf.mxu0
    %555 = vdwg.mxu0
    %v557 = vrot.slane %v551, 4
    %v559 = vadd.f32 %v224, %v557
    %v560 = vmul.f32 %v559, %v252
    %v561 = vtanh.pop %v560
    %v562 = vadd.f32 %v561, 1.0
    %v563 = vmul.f32 %v562, 0.5
    %v565 = vrot.slane %v456, 6
    %v567 = vmul.f32 %v563, %v565
    %569 = vrot.lane.b32.xlu0 %v561, 64
    %v570 = vpop.permute.xlu0 %569
    %v572 = vmul.f32 %v563, %v570
    %574 = vrot.lane.b32.xlu0 %v572, 32
    %v575 = vpop.permute.xlu0 %574
    %v577 = vadd.f32 %v567, %v575
    %v578 = vtanh.pop %v577
    %580 = vrot.lane.b32.xlu0 %v578, 64
    %v581 = vpop.permute.xlu0 %580
    %v583 = vmul.f32 %v563, %v581
    %v584 = vpack.c.bf16 %v583, %v583
    %v586 = vrot.slane %v584, 2
    %587 = vrot.lane.b32.xlu0 %v586, 32
    %v588 = vpop.permute.xlu0 %587
    %v590 = vsel %vm185, %v588, 0
    %592 = vmatprep.subr.bf16.mxu0 0
    %593 = vmatpush1.bf16.msra.mxu0 0
    %594 = vmatprep.subr.bf16.mxu0 0
    %595 = vmatpush1.bf16.msra.mxu0 0
    %596 = vmatprep.subr.bf16.mxu0 0
    %597 = vmatpush1.bf16.msra.mxu0 0
    %598 = vmatprep.subr.bf16.mxu0 0
    %599 = vmatpush1.bf16.msra.mxu0 0
    %600 = vmatprep.subr.bf16.mxu0 0
    %601 = vmatpush1.bf16.msra.mxu0 0
    %602 = vmatprep.subr.bf16.mxu0 0
    %603 = vmatpush1.bf16.msra.mxu0 0
    %604 = vmatprep.subr.bf16.mxu0 0
    %605 = vmatpush1.bf16.msra.mxu0 %v343
    %606 = vmatprep.subr.bf16.mxu0 0
    %607 = vmatpush1.bf16.msra.mxu0 %v342
    %608 = vmatprep.subr.bf16.mxu0 0
    %609 = vmatpush2.bf16.msra.mxu0 0
    %610 = vmatprep.subr.bf16.mxu0 0
    %611 = vmatpush2.bf16.msra.mxu0 0
    %612 = vmatprep.subr.bf16.mxu0 0
    %613 = vmatpush2.bf16.msra.mxu0 0
    %614 = vmatprep.subr.bf16.mxu0 0
    %615 = vmatpush2.bf16.msra.mxu0 0
    %616 = vmatprep.subr.bf16.mxu0 0
    %617 = vmatpush2.bf16.msra.mxu0 0
    %618 = vmatprep.subr.bf16.mxu0 0
    %619 = vmatpush2.bf16.msra.mxu0 0
    %620 = vmatprep.subr.bf16.mxu0 0
    %621 = vmatpush2.bf16.msra.mxu0 0
    %622 = vmatprep.subr.bf16.mxu0 0
    %623 = vmatpush2.bf16.msra.mxu0 0
    %624 = vmatprep.mubr.bf16.mxu0 0
    %625 = vmatmul.mubr.bf16.gmra.mxu0 %v590
    %v626 = vpop.f32.mrf.mxu0
    %v627 = vadd.f32 0.0, %v626
    %v628 = vpop.f32.mrf.mxu0
    %v629 = vpop.f32.mrf.mxu0
    %v630 = vpop.f32.mrf.mxu0
    %631 = vdwg.mxu0
    %v632 = vtanh.pop %v627
    %v633 = vmul.f32 %v632, %v243
    %v634 = vsel %vm391, %v633, 0.0
    %635 = vadd.xlane.f32.xlu0 %v634
    %v636 = vpop.xlane.xlu0 %635
    %637 = vmatprep.subr.bf16.mxu0 0
    %638 = vmatpush1.bf16.msra.mxu0 0
    %639 = vmatprep.subr.bf16.mxu0 0
    %640 = vmatpush1.bf16.msra.mxu0 0
    %641 = vmatprep.subr.bf16.mxu0 0
    %642 = vmatpush1.bf16.msra.mxu0 0
    %643 = vmatprep.subr.bf16.mxu0 0
    %644 = vmatpush1.bf16.msra.mxu0 0
    %645 = vmatprep.subr.bf16.mxu0 0
    %646 = vmatpush1.bf16.msra.mxu0 0
    %647 = vmatprep.subr.bf16.mxu0 0
    %648 = vmatpush1.bf16.msra.mxu0 0
    %649 = vmatprep.subr.bf16.mxu0 0
    %650 = vmatpush1.bf16.msra.mxu0 %v262
    %651 = vmatprep.subr.bf16.mxu0 0
    %652 = vmatpush1.bf16.msra.mxu0 %v261
    %653 = vmatprep.subr.bf16.mxu0 0
    %654 = vmatpush2.bf16.msra.mxu0 0
    %655 = vmatprep.subr.bf16.mxu0 0
    %656 = vmatpush2.bf16.msra.mxu0 0
    %657 = vmatprep.subr.bf16.mxu0 0
    %658 = vmatpush2.bf16.msra.mxu0 0
    %659 = vmatprep.subr.bf16.mxu0 0
    %660 = vmatpush2.bf16.msra.mxu0 0
    %661 = vmatprep.subr.bf16.mxu0 0
    %662 = vmatpush2.bf16.msra.mxu0 0
    %663 = vmatprep.subr.bf16.mxu0 0
    %664 = vmatpush2.bf16.msra.mxu0 0
    %665 = vmatprep.subr.bf16.mxu0 0
    %666 = vmatpush2.bf16.msra.mxu0 0
    %667 = vmatprep.subr.bf16.mxu0 0
    %668 = vmatpush2.bf16.msra.mxu0 0
    %669 = vmatprep.mubr.bf16.mxu0 0
    %670 = vmatmul.mubr.bf16.gmra.mxu0 %v590
    %v671 = vpop.f32.mrf.mxu0
    %v672 = vadd.f32 0.0, %v671
    %v673 = vpop.f32.mrf.mxu0
    %v674 = vpop.f32.mrf.mxu0
    %v675 = vpop.f32.mrf.mxu0
    %676 = vdwg.mxu0
    %v678 = vrot.slane %v672, 2
    %v680 = vadd.f32 %v224, %v678
    %v681 = vmul.f32 %v680, %v252
    %v682 = vtanh.pop %v681
    %v683 = vadd.f32 %v682, 1.0
    %v684 = vmul.f32 %v683, 0.5
    %v686 = vrot.slane %v577, 6
    %v688 = vmul.f32 %v684, %v686
    %690 = vrot.lane.b32.xlu0 %v682, 64
    %v691 = vpop.permute.xlu0 %690
    %v693 = vmul.f32 %v684, %v691
    %695 = vrot.lane.b32.xlu0 %v693, 32
    %v696 = vpop.permute.xlu0 %695
    %v698 = vadd.f32 %v688, %v696
    %v699 = vtanh.pop %v698
    %701 = vrot.lane.b32.xlu0 %v699, 64
    %v702 = vpop.permute.xlu0 %701
    %v704 = vmul.f32 %v684, %v702
    %v705 = vpack.c.bf16 %v704, %v704
    %v707 = vrot.slane %v705, 3
    %708 = vrot.lane.b32.xlu0 %v707, 32
    %v709 = vpop.permute.xlu0 %708
    %v711 = vsel %vm185, %v709, 0
    %713 = vmatprep.subr.bf16.mxu0 0
    %714 = vmatpush1.bf16.msra.mxu0 0
    %715 = vmatprep.subr.bf16.mxu0 0
    %716 = vmatpush1.bf16.msra.mxu0 0
    %717 = vmatprep.subr.bf16.mxu0 0
    %718 = vmatpush1.bf16.msra.mxu0 0
    %719 = vmatprep.subr.bf16.mxu0 0
    %720 = vmatpush1.bf16.msra.mxu0 0
    %721 = vmatprep.subr.bf16.mxu0 0
    %722 = vmatpush1.bf16.msra.mxu0 0
    %723 = vmatprep.subr.bf16.mxu0 0
    %724 = vmatpush1.bf16.msra.mxu0 0
    %725 = vmatprep.subr.bf16.mxu0 0
    %726 = vmatpush1.bf16.msra.mxu0 %v343
    %727 = vmatprep.subr.bf16.mxu0 0
    %728 = vmatpush1.bf16.msra.mxu0 %v342
    %729 = vmatprep.subr.bf16.mxu0 0
    %730 = vmatpush2.bf16.msra.mxu0 0
    %731 = vmatprep.subr.bf16.mxu0 0
    %732 = vmatpush2.bf16.msra.mxu0 0
    %733 = vmatprep.subr.bf16.mxu0 0
    %734 = vmatpush2.bf16.msra.mxu0 0
    %735 = vmatprep.subr.bf16.mxu0 0
    %736 = vmatpush2.bf16.msra.mxu0 0
    %737 = vmatprep.subr.bf16.mxu0 0
    %738 = vmatpush2.bf16.msra.mxu0 0
    %739 = vmatprep.subr.bf16.mxu0 0
    %740 = vmatpush2.bf16.msra.mxu0 0
    %741 = vmatprep.subr.bf16.mxu0 0
    %742 = vmatpush2.bf16.msra.mxu0 0
    %743 = vmatprep.subr.bf16.mxu0 0
    %744 = vmatpush2.bf16.msra.mxu0 0
    %745 = vmatprep.mubr.bf16.mxu0 0
    %746 = vmatmul.mubr.bf16.gmra.mxu0 %v711
    %v747 = vpop.f32.mrf.mxu0
    %v748 = vadd.f32 0.0, %v747
    %v749 = vpop.f32.mrf.mxu0
    %v750 = vpop.f32.mrf.mxu0
    %v751 = vpop.f32.mrf.mxu0
    %752 = vdwg.mxu0
    %v753 = vtanh.pop %v748
    %v754 = vmul.f32 %v753, %v243
    %v755 = vsel %vm391, %v754, 0.0
    %756 = vadd.xlane.f32.xlu0 %v755
    %v757 = vpop.xlane.xlu0 %756
    %758 = vmatprep.subr.bf16.mxu0 0
    %759 = vmatpush1.bf16.msra.mxu0 0
    %760 = vmatprep.subr.bf16.mxu0 0
    %761 = vmatpush1.bf16.msra.mxu0 0
    %762 = vmatprep.subr.bf16.mxu0 0
    %763 = vmatpush1.bf16.msra.mxu0 0
    %764 = vmatprep.subr.bf16.mxu0 0
    %765 = vmatpush1.bf16.msra.mxu0 0
    %766 = vmatprep.subr.bf16.mxu0 0
    %767 = vmatpush1.bf16.msra.mxu0 0
    %768 = vmatprep.subr.bf16.mxu0 0
    %769 = vmatpush1.bf16.msra.mxu0 0
    %770 = vmatprep.subr.bf16.mxu0 0
    %771 = vmatpush1.bf16.msra.mxu0 %v262
    %772 = vmatprep.subr.bf16.mxu0 0
    %773 = vmatpush1.bf16.msra.mxu0 %v261
    %774 = vmatprep.subr.bf16.mxu0 0
    %775 = vmatpush2.bf16.msra.mxu0 0
    %776 = vmatprep.subr.bf16.mxu0 0
    %777 = vmatpush2.bf16.msra.mxu0 0
    %778 = vmatprep.subr.bf16.mxu0 0
    %779 = vmatpush2.bf16.msra.mxu0 0
    %780 = vmatprep.subr.bf16.mxu0 0
    %781 = vmatpush2.bf16.msra.mxu0 0
    %782 = vmatprep.subr.bf16.mxu0 0
    %783 = vmatpush2.bf16.msra.mxu0 0
    %784 = vmatprep.subr.bf16.mxu0 0
    %785 = vmatpush2.bf16.msra.mxu0 0
    %786 = vmatprep.subr.bf16.mxu0 0
    %787 = vmatpush2.bf16.msra.mxu0 0
    %788 = vmatprep.subr.bf16.mxu0 0
    %789 = vmatpush2.bf16.msra.mxu0 0
    %790 = vmatprep.mubr.bf16.mxu0 0
    %791 = vmatmul.mubr.bf16.gmra.mxu0 %v711
    %v792 = vpop.f32.mrf.mxu0
    %v793 = vadd.f32 0.0, %v792
    %v794 = vpop.f32.mrf.mxu0
    %v795 = vpop.f32.mrf.mxu0
    %v796 = vpop.f32.mrf.mxu0
    %797 = vdwg.mxu0
    %v798 = vadd.f32 %v227, %v793
    %v799 = vmul.f32 %v798, %v252
    %v800 = vtanh.pop %v799
    %v801 = vadd.f32 %v800, 1.0
    %v802 = vmul.f32 %v801, 0.5
    %v804 = vrot.slane %v698, 6
    %v806 = vmul.f32 %v802, %v804
    %808 = vrot.lane.b32.xlu0 %v800, 64
    %v809 = vpop.permute.xlu0 %808
    %v811 = vmul.f32 %v802, %v809
    %813 = vrot.lane.b32.xlu0 %v811, 32
    %v814 = vpop.permute.xlu0 %813
    %v816 = vadd.f32 %v806, %v814
    %v817 = vtanh.pop %v816
    %819 = vrot.lane.b32.xlu0 %v817, 64
    %v820 = vpop.permute.xlu0 %819
    %v822 = vmul.f32 %v802, %v820
    %v823 = vpack.c.bf16 %v822, %v822
    %825 = vrot.lane.b32.xlu0 %v823, 32
    %v826 = vpop.permute.xlu0 %825
    %v828 = vsel %vm185, %v826, 0
    %830 = vmatprep.subr.bf16.mxu0 0
    %831 = vmatpush1.bf16.msra.mxu0 0
    %832 = vmatprep.subr.bf16.mxu0 0
    %833 = vmatpush1.bf16.msra.mxu0 0
    %834 = vmatprep.subr.bf16.mxu0 0
    %835 = vmatpush1.bf16.msra.mxu0 0
    %836 = vmatprep.subr.bf16.mxu0 0
    %837 = vmatpush1.bf16.msra.mxu0 0
    %838 = vmatprep.subr.bf16.mxu0 0
    %839 = vmatpush1.bf16.msra.mxu0 0
    %840 = vmatprep.subr.bf16.mxu0 0
    %841 = vmatpush1.bf16.msra.mxu0 0
    %842 = vmatprep.subr.bf16.mxu0 0
    %843 = vmatpush1.bf16.msra.mxu0 %v343
    %844 = vmatprep.subr.bf16.mxu0 0
    %845 = vmatpush1.bf16.msra.mxu0 %v342
    %846 = vmatprep.subr.bf16.mxu0 0
    %847 = vmatpush2.bf16.msra.mxu0 0
    %848 = vmatprep.subr.bf16.mxu0 0
    %849 = vmatpush2.bf16.msra.mxu0 0
    %850 = vmatprep.subr.bf16.mxu0 0
    %851 = vmatpush2.bf16.msra.mxu0 0
    %852 = vmatprep.subr.bf16.mxu0 0
    %853 = vmatpush2.bf16.msra.mxu0 0
    %854 = vmatprep.subr.bf16.mxu0 0
    %855 = vmatpush2.bf16.msra.mxu0 0
    %856 = vmatprep.subr.bf16.mxu0 0
    %857 = vmatpush2.bf16.msra.mxu0 0
    %858 = vmatprep.subr.bf16.mxu0 0
    %859 = vmatpush2.bf16.msra.mxu0 0
    %860 = vmatprep.subr.bf16.mxu0 0
    %861 = vmatpush2.bf16.msra.mxu0 0
    %862 = vmatprep.mubr.bf16.mxu0 0
    %863 = vmatmul.mubr.bf16.gmra.mxu0 %v828
    %v864 = vpop.f32.mrf.mxu0
    %v865 = vadd.f32 0.0, %v864
    %v866 = vpop.f32.mrf.mxu0
    %v867 = vpop.f32.mrf.mxu0
    %v868 = vpop.f32.mrf.mxu0
    %869 = vdwg.mxu0
    %v870 = vtanh.pop %v865
    %v871 = vmul.f32 %v870, %v243
    %v872 = vsel %vm391, %v871, 0.0
    %873 = vadd.xlane.f32.xlu0 %v872
    %v874 = vpop.xlane.xlu0 %873
    %875 = vmatprep.subr.bf16.mxu0 0
    %876 = vmatpush1.bf16.msra.mxu0 0
    %877 = vmatprep.subr.bf16.mxu0 0
    %878 = vmatpush1.bf16.msra.mxu0 0
    %879 = vmatprep.subr.bf16.mxu0 0
    %880 = vmatpush1.bf16.msra.mxu0 0
    %881 = vmatprep.subr.bf16.mxu0 0
    %882 = vmatpush1.bf16.msra.mxu0 0
    %883 = vmatprep.subr.bf16.mxu0 0
    %884 = vmatpush1.bf16.msra.mxu0 0
    %885 = vmatprep.subr.bf16.mxu0 0
    %886 = vmatpush1.bf16.msra.mxu0 0
    %887 = vmatprep.subr.bf16.mxu0 0
    %888 = vmatpush1.bf16.msra.mxu0 %v262
    %889 = vmatprep.subr.bf16.mxu0 0
    %890 = vmatpush1.bf16.msra.mxu0 %v261
    %891 = vmatprep.subr.bf16.mxu0 0
    %892 = vmatpush2.bf16.msra.mxu0 0
    %893 = vmatprep.subr.bf16.mxu0 0
    %894 = vmatpush2.bf16.msra.mxu0 0
    %895 = vmatprep.subr.bf16.mxu0 0
    %896 = vmatpush2.bf16.msra.mxu0 0
    %897 = vmatprep.subr.bf16.mxu0 0
    %898 = vmatpush2.bf16.msra.mxu0 0
    %899 = vmatprep.subr.bf16.mxu0 0
    %900 = vmatpush2.bf16.msra.mxu0 0
    %901 = vmatprep.subr.bf16.mxu0 0
    %902 = vmatpush2.bf16.msra.mxu0 0
    %903 = vmatprep.subr.bf16.mxu0 0
    %904 = vmatpush2.bf16.msra.mxu0 0
    %905 = vmatprep.subr.bf16.mxu0 0
    %906 = vmatpush2.bf16.msra.mxu0 0
    %907 = vmatprep.mubr.bf16.mxu0 0
    %908 = vmatmul.mubr.bf16.gmra.mxu0 %v828
    %v909 = vpop.f32.mrf.mxu0
    %v910 = vadd.f32 0.0, %v909
    %v911 = vpop.f32.mrf.mxu0
    %v912 = vpop.f32.mrf.mxu0
    %v913 = vpop.f32.mrf.mxu0
    %914 = vdwg.mxu0
    %v916 = vrot.slane %v910, 6
    %v918 = vadd.f32 %v227, %v916
    %v919 = vmul.f32 %v918, %v252
    %v920 = vtanh.pop %v919
    %v921 = vadd.f32 %v920, 1.0
    %v922 = vmul.f32 %v921, 0.5
    %v924 = vrot.slane %v816, 6
    %v926 = vmul.f32 %v922, %v924
    %928 = vrot.lane.b32.xlu0 %v920, 64
    %v929 = vpop.permute.xlu0 %928
    %v931 = vmul.f32 %v922, %v929
    %933 = vrot.lane.b32.xlu0 %v931, 32
    %v934 = vpop.permute.xlu0 %933
    %v936 = vadd.f32 %v926, %v934
    %v937 = vtanh.pop %v936
    %939 = vrot.lane.b32.xlu0 %v937, 64
    %v940 = vpop.permute.xlu0 %939
    %v942 = vmul.f32 %v922, %v940
    %v943 = vpack.c.bf16 %v942, %v942
    %v945 = vrot.slane %v943, 1
    %946 = vrot.lane.b32.xlu0 %v945, 32
    %v947 = vpop.permute.xlu0 %946
    %v949 = vsel %vm185, %v947, 0
    %951 = vmatprep.subr.bf16.mxu0 0
    %952 = vmatpush1.bf16.msra.mxu0 0
    %953 = vmatprep.subr.bf16.mxu0 0
    %954 = vmatpush1.bf16.msra.mxu0 0
    %955 = vmatprep.subr.bf16.mxu0 0
    %956 = vmatpush1.bf16.msra.mxu0 0
    %957 = vmatprep.subr.bf16.mxu0 0
    %958 = vmatpush1.bf16.msra.mxu0 0
    %959 = vmatprep.subr.bf16.mxu0 0
    %960 = vmatpush1.bf16.msra.mxu0 0
    %961 = vmatprep.subr.bf16.mxu0 0
    %962 = vmatpush1.bf16.msra.mxu0 0
    %963 = vmatprep.subr.bf16.mxu0 0
    %964 = vmatpush1.bf16.msra.mxu0 %v343
    %965 = vmatprep.subr.bf16.mxu0 0
    %966 = vmatpush1.bf16.msra.mxu0 %v342
    %967 = vmatprep.subr.bf16.mxu0 0
    %968 = vmatpush2.bf16.msra.mxu0 0
    %969 = vmatprep.subr.bf16.mxu0 0
    %970 = vmatpush2.bf16.msra.mxu0 0
    %971 = vmatprep.subr.bf16.mxu0 0
    %972 = vmatpush2.bf16.msra.mxu0 0
    %973 = vmatprep.subr.bf16.mxu0 0
    %974 = vmatpush2.bf16.msra.mxu0 0
    %975 = vmatprep.subr.bf16.mxu0 0
    %976 = vmatpush2.bf16.msra.mxu0 0
    %977 = vmatprep.subr.bf16.mxu0 0
    %978 = vmatpush2.bf16.msra.mxu0 0
    %979 = vmatprep.subr.bf16.mxu0 0
    %980 = vmatpush2.bf16.msra.mxu0 0
    %981 = vmatprep.subr.bf16.mxu0 0
    %982 = vmatpush2.bf16.msra.mxu0 0
    %983 = vmatprep.mubr.bf16.mxu0 0
    %984 = vmatmul.mubr.bf16.gmra.mxu0 %v949
    %v985 = vpop.f32.mrf.mxu0
    %v986 = vadd.f32 0.0, %v985
    %v987 = vpop.f32.mrf.mxu0
    %v988 = vpop.f32.mrf.mxu0
    %v989 = vpop.f32.mrf.mxu0
    %990 = vdwg.mxu0
    %v991 = vtanh.pop %v986
    %v992 = vmul.f32 %v991, %v243
    %v993 = vsel %vm391, %v992, 0.0
    %994 = vadd.xlane.f32.xlu0 %v993
    %v995 = vpop.xlane.xlu0 %994
    %996 = vmatprep.subr.bf16.mxu0 0
    %997 = vmatpush1.bf16.msra.mxu0 0
    %998 = vmatprep.subr.bf16.mxu0 0
    %999 = vmatpush1.bf16.msra.mxu0 0
    %1000 = vmatprep.subr.bf16.mxu0 0
    %1001 = vmatpush1.bf16.msra.mxu0 0
    %1002 = vmatprep.subr.bf16.mxu0 0
    %1003 = vmatpush1.bf16.msra.mxu0 0
    %1004 = vmatprep.subr.bf16.mxu0 0
    %1005 = vmatpush1.bf16.msra.mxu0 0
    %1006 = vmatprep.subr.bf16.mxu0 0
    %1007 = vmatpush1.bf16.msra.mxu0 0
    %1008 = vmatprep.subr.bf16.mxu0 0
    %1009 = vmatpush1.bf16.msra.mxu0 %v262
    %1010 = vmatprep.subr.bf16.mxu0 0
    %1011 = vmatpush1.bf16.msra.mxu0 %v261
    %1012 = vmatprep.subr.bf16.mxu0 0
    %1013 = vmatpush2.bf16.msra.mxu0 0
    %1014 = vmatprep.subr.bf16.mxu0 0
    %1015 = vmatpush2.bf16.msra.mxu0 0
    %1016 = vmatprep.subr.bf16.mxu0 0
    %1017 = vmatpush2.bf16.msra.mxu0 0
    %1018 = vmatprep.subr.bf16.mxu0 0
    %1019 = vmatpush2.bf16.msra.mxu0 0
    %1020 = vmatprep.subr.bf16.mxu0 0
    %1021 = vmatpush2.bf16.msra.mxu0 0
    %1022 = vmatprep.subr.bf16.mxu0 0
    %1023 = vmatpush2.bf16.msra.mxu0 0
    %1024 = vmatprep.subr.bf16.mxu0 0
    %1025 = vmatpush2.bf16.msra.mxu0 0
    %1026 = vmatprep.subr.bf16.mxu0 0
    %1027 = vmatpush2.bf16.msra.mxu0 0
    %1028 = vmatprep.mubr.bf16.mxu0 0
    %1029 = vmatmul.mubr.bf16.gmra.mxu0 %v949
    %v1030 = vpop.f32.mrf.mxu0
    %v1031 = vadd.f32 0.0, %v1030
    %v1032 = vpop.f32.mrf.mxu0
    %v1033 = vpop.f32.mrf.mxu0
    %v1034 = vpop.f32.mrf.mxu0
    %1035 = vdwg.mxu0
    %v1037 = vrot.slane %v1031, 4
    %v1039 = vadd.f32 %v227, %v1037
    %v1040 = vmul.f32 %v1039, %v252
    %v1041 = vtanh.pop %v1040
    %v1042 = vadd.f32 %v1041, 1.0
    %v1043 = vmul.f32 %v1042, 0.5
    %v1045 = vrot.slane %v936, 6
    %v1047 = vmul.f32 %v1043, %v1045
    %1049 = vrot.lane.b32.xlu0 %v1041, 64
    %v1050 = vpop.permute.xlu0 %1049
    %v1052 = vmul.f32 %v1043, %v1050
    %1054 = vrot.lane.b32.xlu0 %v1052, 32
    %v1055 = vpop.permute.xlu0 %1054
    %v1057 = vadd.f32 %v1047, %v1055
    %v1058 = vtanh.pop %v1057
    %1060 = vrot.lane.b32.xlu0 %v1058, 64
    %v1061 = vpop.permute.xlu0 %1060
    %v1063 = vmul.f32 %v1043, %v1061
    %v1064 = vpack.c.bf16 %v1063, %v1063
    %v1066 = vrot.slane %v1064, 2
    %1067 = vrot.lane.b32.xlu0 %v1066, 32
    %v1068 = vpop.permute.xlu0 %1067
    %v1070 = vsel %vm185, %v1068, 0
    %1072 = vmatprep.subr.bf16.mxu0 0
    %1073 = vmatpush1.bf16.msra.mxu0 0
    %1074 = vmatprep.subr.bf16.mxu0 0
    %1075 = vmatpush1.bf16.msra.mxu0 0
    %1076 = vmatprep.subr.bf16.mxu0 0
    %1077 = vmatpush1.bf16.msra.mxu0 0
    %1078 = vmatprep.subr.bf16.mxu0 0
    %1079 = vmatpush1.bf16.msra.mxu0 0
    %1080 = vmatprep.subr.bf16.mxu0 0
    %1081 = vmatpush1.bf16.msra.mxu0 0
    %1082 = vmatprep.subr.bf16.mxu0 0
    %1083 = vmatpush1.bf16.msra.mxu0 0
    %1084 = vmatprep.subr.bf16.mxu0 0
    %1085 = vmatpush1.bf16.msra.mxu0 %v343
    %1086 = vmatprep.subr.bf16.mxu0 0
    %1087 = vmatpush1.bf16.msra.mxu0 %v342
    %1088 = vmatprep.subr.bf16.mxu0 0
    %1089 = vmatpush2.bf16.msra.mxu0 0
    %1090 = vmatprep.subr.bf16.mxu0 0
    %1091 = vmatpush2.bf16.msra.mxu0 0
    %1092 = vmatprep.subr.bf16.mxu0 0
    %1093 = vmatpush2.bf16.msra.mxu0 0
    %1094 = vmatprep.subr.bf16.mxu0 0
    %1095 = vmatpush2.bf16.msra.mxu0 0
    %1096 = vmatprep.subr.bf16.mxu0 0
    %1097 = vmatpush2.bf16.msra.mxu0 0
    %1098 = vmatprep.subr.bf16.mxu0 0
    %1099 = vmatpush2.bf16.msra.mxu0 0
    %1100 = vmatprep.subr.bf16.mxu0 0
    %1101 = vmatpush2.bf16.msra.mxu0 0
    %1102 = vmatprep.subr.bf16.mxu0 0
    %1103 = vmatpush2.bf16.msra.mxu0 0
    %1104 = vmatprep.mubr.bf16.mxu0 0
    %1105 = vmatmul.mubr.bf16.gmra.mxu0 %v1070
    %v1106 = vpop.f32.mrf.mxu0
    %v1107 = vadd.f32 0.0, %v1106
    %v1108 = vpop.f32.mrf.mxu0
    %v1109 = vpop.f32.mrf.mxu0
    %v1110 = vpop.f32.mrf.mxu0
    %1111 = vdwg.mxu0
    %v1112 = vtanh.pop %v1107
    %v1113 = vmul.f32 %v1112, %v243
    %v1114 = vsel %vm391, %v1113, 0.0
    %1115 = vadd.xlane.f32.xlu0 %v1114
    %v1116 = vpop.xlane.xlu0 %1115
    %1117 = vmatprep.subr.bf16.mxu0 0
    %1118 = vmatpush1.bf16.msra.mxu0 0
    %1119 = vmatprep.subr.bf16.mxu0 0
    %1120 = vmatpush1.bf16.msra.mxu0 0
    %1121 = vmatprep.subr.bf16.mxu0 0
    %1122 = vmatpush1.bf16.msra.mxu0 0
    %1123 = vmatprep.subr.bf16.mxu0 0
    %1124 = vmatpush1.bf16.msra.mxu0 0
    %1125 = vmatprep.subr.bf16.mxu0 0
    %1126 = vmatpush1.bf16.msra.mxu0 0
    %1127 = vmatprep.subr.bf16.mxu0 0
    %1128 = vmatpush1.bf16.msra.mxu0 0
    %1129 = vmatprep.subr.bf16.mxu0 0
    %1130 = vmatpush1.bf16.msra.mxu0 %v262
    %1131 = vmatprep.subr.bf16.mxu0 0
    %1132 = vmatpush1.bf16.msra.mxu0 %v261
    %1133 = vmatprep.subr.bf16.mxu0 0
    %1134 = vmatpush2.bf16.msra.mxu0 0
    %1135 = vmatprep.subr.bf16.mxu0 0
    %1136 = vmatpush2.bf16.msra.mxu0 0
    %1137 = vmatprep.subr.bf16.mxu0 0
    %1138 = vmatpush2.bf16.msra.mxu0 0
    %1139 = vmatprep.subr.bf16.mxu0 0
    %1140 = vmatpush2.bf16.msra.mxu0 0
    %1141 = vmatprep.subr.bf16.mxu0 0
    %1142 = vmatpush2.bf16.msra.mxu0 0
    %1143 = vmatprep.subr.bf16.mxu0 0
    %1144 = vmatpush2.bf16.msra.mxu0 0
    %1145 = vmatprep.subr.bf16.mxu0 0
    %1146 = vmatpush2.bf16.msra.mxu0 0
    %1147 = vmatprep.subr.bf16.mxu0 0
    %1148 = vmatpush2.bf16.msra.mxu0 0
    %1149 = vmatprep.mubr.bf16.mxu0 0
    %1150 = vmatmul.mubr.bf16.gmra.mxu0 %v1070
    %v1151 = vpop.f32.mrf.mxu0
    %v1152 = vadd.f32 0.0, %v1151
    %v1153 = vpop.f32.mrf.mxu0
    %v1154 = vpop.f32.mrf.mxu0
    %v1155 = vpop.f32.mrf.mxu0
    %1156 = vdwg.mxu0
    %v1158 = vrot.slane %v1152, 2
    %v1160 = vadd.f32 %v227, %v1158
    %v1161 = vmul.f32 %v1160, %v252
    %v1162 = vtanh.pop %v1161
    %v1163 = vadd.f32 %v1162, 1.0
    %v1164 = vmul.f32 %v1163, 0.5
    %v1166 = vrot.slane %v1057, 6
    %v1168 = vmul.f32 %v1164, %v1166
    %1170 = vrot.lane.b32.xlu0 %v1162, 64
    %v1171 = vpop.permute.xlu0 %1170
    %v1173 = vmul.f32 %v1164, %v1171
    %1175 = vrot.lane.b32.xlu0 %v1173, 32
    %v1176 = vpop.permute.xlu0 %1175
    %v1178 = vadd.f32 %v1168, %v1176
    %v1179 = vtanh.pop %v1178
    %1181 = vrot.lane.b32.xlu0 %v1179, 64
    %v1182 = vpop.permute.xlu0 %1181
    %v1184 = vmul.f32 %v1164, %v1182
    %v1185 = vpack.c.bf16 %v1184, %v1184
    %v1187 = vrot.slane %v1185, 3
    %1188 = vrot.lane.b32.xlu0 %v1187, 32
    %v1189 = vpop.permute.xlu0 %1188
    %v1191 = vsel %vm185, %v1189, 0
    %1193 = vmatprep.subr.bf16.mxu0 0
    %1194 = vmatpush1.bf16.msra.mxu0 0
    %1195 = vmatprep.subr.bf16.mxu0 0
    %1196 = vmatpush1.bf16.msra.mxu0 0
    %1197 = vmatprep.subr.bf16.mxu0 0
    %1198 = vmatpush1.bf16.msra.mxu0 0
    %1199 = vmatprep.subr.bf16.mxu0 0
    %1200 = vmatpush1.bf16.msra.mxu0 0
    %1201 = vmatprep.subr.bf16.mxu0 0
    %1202 = vmatpush1.bf16.msra.mxu0 0
    %1203 = vmatprep.subr.bf16.mxu0 0
    %1204 = vmatpush1.bf16.msra.mxu0 0
    %1205 = vmatprep.subr.bf16.mxu0 0
    %1206 = vmatpush1.bf16.msra.mxu0 %v343
    %1207 = vmatprep.subr.bf16.mxu0 0
    %1208 = vmatpush1.bf16.msra.mxu0 %v342
    %1209 = vmatprep.subr.bf16.mxu0 0
    %1210 = vmatpush2.bf16.msra.mxu0 0
    %1211 = vmatprep.subr.bf16.mxu0 0
    %1212 = vmatpush2.bf16.msra.mxu0 0
    %1213 = vmatprep.subr.bf16.mxu0 0
    %1214 = vmatpush2.bf16.msra.mxu0 0
    %1215 = vmatprep.subr.bf16.mxu0 0
    %1216 = vmatpush2.bf16.msra.mxu0 0
    %1217 = vmatprep.subr.bf16.mxu0 0
    %1218 = vmatpush2.bf16.msra.mxu0 0
    %1219 = vmatprep.subr.bf16.mxu0 0
    %1220 = vmatpush2.bf16.msra.mxu0 0
    %1221 = vmatprep.subr.bf16.mxu0 0
    %1222 = vmatpush2.bf16.msra.mxu0 0
    %1223 = vmatprep.subr.bf16.mxu0 0
    %1224 = vmatpush2.bf16.msra.mxu0 0
    %1225 = vmatprep.mubr.bf16.mxu0 0
    %1226 = vmatmul.mubr.bf16.gmra.mxu0 %v1191
    %v1227 = vpop.f32.mrf.mxu0
    %v1228 = vadd.f32 0.0, %v1227
    %v1229 = vpop.f32.mrf.mxu0
    %v1230 = vpop.f32.mrf.mxu0
    %v1231 = vpop.f32.mrf.mxu0
    %1232 = vdwg.mxu0
    %v1233 = vtanh.pop %v1228
    %v1234 = vmul.f32 %v1233, %v243
    %v1235 = vsel %vm391, %v1234, 0.0
    %1236 = vadd.xlane.f32.xlu0 %v1235
    %v1237 = vpop.xlane.xlu0 %1236
    %vm1238 = vcmask 7168
    %v1239 = vsel %vm1238, %v394, %v515
    %vm1240 = vcmask 15360
    %v1241 = vsel %vm1240, %v1239, %v636
    %vm1242 = vcmask 23552
    %v1243 = vsel %vm1242, %v1241, %v757
    %vm1244 = vcmask 31744
    %v1245 = vsel %vm1244, %v1243, %v874
    %vm1246 = vcmask 39936
    %v1247 = vsel %vm1246, %v1245, %v995
    %vm1248 = vcmask 48128
    %v1249 = vsel %vm1248, %v1247, %v1116
    %vm1250 = vcmask 56320
    %v1251 = vsel %vm1250, %v1249, %v1237
    %vm1252 = vcmask 58368
    %v1253 = vsel %vm1252, %v1251, -inf
    %1254 = vmax.xlane.f32.xlu0 %v1253
    %v1255 = vpop.xlane.xlu0 %1254
    %v1256 = vsub.f32 %v1251, %v1255
    %v1257 = vmul.f32 %v1256, 1.442695
    %v1258 = vpow.pop %v1257
    %v1259 = vsel %vm1252, %v1258, 0.0
    %1260 = vadd.xlane.f32.xlu0 %v1259
    %v1261 = vpop.xlane.xlu0 %1260
    %v1262 = vrcp.pop %v1261
    %v1263 = vmul.f32 %v1258, %v1262
    %1265 = vset.pattern.permute.xlu0 0
    %1266 = vperm.xlu0 %1265, %v1263
    %v1267 = vpop.permute.xlu0 %1266
    %v1269 = vmul.f32 %v1267, %v329
    %1270 = vset.pattern.permute.xlu0 1
    %1271 = vperm.xlu0 %1270, %v1263
    %v1272 = vpop.permute.xlu0 %1271
    %v1275 = vrot.slane %v462, 2
    %1276 = vrot.lane.b32.xlu0 %v1275, 32
    %v1277 = vpop.permute.xlu0 %1276
    %v1279 = vmul.f32 %v1272, %v1277
    %1281 = vrot.lane.b32.xlu0 %v1279, 96
    %v1282 = vpop.permute.xlu0 %1281
    %v1284 = vadd.f32 %v1269, %v1282
    %1285 = vset.pattern.permute.xlu0 2
    %1286 = vperm.xlu0 %1285, %v1263
    %v1287 = vpop.permute.xlu0 %1286
    %v1290 = vrot.slane %v583, 4
    %1291 = vrot.lane.b32.xlu0 %v1290, 32
    %v1292 = vpop.permute.xlu0 %1291
    %v1294 = vmul.f32 %v1287, %v1292
    %1296 = vrot.lane.b32.xlu0 %v1294, 96
    %v1297 = vpop.permute.xlu0 %1296
    %v1299 = vadd.f32 %v1284, %v1297
    %1300 = vset.pattern.permute.xlu0 3
    %1301 = vperm.xlu0 %1300, %v1263
    %v1302 = vpop.permute.xlu0 %1301
    %v1305 = vrot.slane %v704, 6
    %1306 = vrot.lane.b32.xlu0 %v1305, 32
    %v1307 = vpop.permute.xlu0 %1306
    %v1309 = vmul.f32 %v1302, %v1307
    %1311 = vrot.lane.b32.xlu0 %v1309, 96
    %v1312 = vpop.permute.xlu0 %1311
    %v1314 = vadd.f32 %v1299, %v1312
    %1315 = vset.pattern.permute.xlu0 4
    %1316 = vperm.xlu0 %1315, %v1263
    %v1317 = vpop.permute.xlu0 %1316
    %v1319 = vmul.f32 %v1317, %v822
    %v1320 = vadd.f32 %v1314, %v1319
    %1321 = vset.pattern.permute.xlu0 5
    %1322 = vperm.xlu0 %1321, %v1263
    %v1323 = vpop.permute.xlu0 %1322
    %v1326 = vrot.slane %v942, 2
    %1327 = vrot.lane.b32.xlu0 %v1326, 32
    %v1328 = vpop.permute.xlu0 %1327
    %v1330 = vmul.f32 %v1323, %v1328
    %1332 = vrot.lane.b32.xlu0 %v1330, 96
    %v1333 = vpop.permute.xlu0 %1332
    %v1335 = vadd.f32 %v1320, %v1333
    %1336 = vset.pattern.permute.xlu0 6
    %1337 = vperm.xlu0 %1336, %v1263
    %v1338 = vpop.permute.xlu0 %1337
    %v1341 = vrot.slane %v1063, 4
    %1342 = vrot.lane.b32.xlu0 %v1341, 32
    %v1343 = vpop.permute.xlu0 %1342
    %v1345 = vmul.f32 %v1338, %v1343
    %1347 = vrot.lane.b32.xlu0 %v1345, 96
    %v1348 = vpop.permute.xlu0 %1347
    %v1350 = vadd.f32 %v1335, %v1348
    %1351 = vset.pattern.permute.xlu0 7
    %1352 = vperm.xlu0 %1351, %v1263
    %v1353 = vpop.permute.xlu0 %1352
    %v1356 = vrot.slane %v1184, 6
    %1357 = vrot.lane.b32.xlu0 %v1356, 32
    %v1358 = vpop.permute.xlu0 %1357
    %v1360 = vmul.f32 %v1353, %v1358
    %1362 = vrot.lane.b32.xlu0 %v1360, 96
    %v1363 = vpop.permute.xlu0 %1362
    %v1365 = vadd.f32 %v1350, %v1363
    %1367 = vrot.lane.b32.xlu0 %v1365, 32
    %v1368 = vpop.permute.xlu0 %1367
    %1370 = vrot.lane.b32.xlu0 %v1356, 64
    %v1371 = vpop.permute.xlu0 %1370
    %v1373 = vsel %vm185, %v1368, %v1371
    %v1374 = vpack.c.bf16 %v1373, %v1373
    %v1375 = vld [vmem:[%s7] sm:$0xf]
    %v1376 = vld [vmem:[%s7 + $0x4] sm:$0xf]
    %v1377 = vld [vmem:[%s7 + $0x8] sm:$0xf]
    %v1378 = vld [vmem:[%s7 + $0xc] sm:$0xf]
    %v1379 = vld [vmem:[%s7 + $0x10] sm:$0xf]
    %v1380 = vld [vmem:[%s7 + $0x14] sm:$0xf]
    %v1381 = vld [vmem:[%s7 + $0x18] sm:$0xf]
    %v1382 = vld [vmem:[%s7 + $0x1c] sm:$0xf]
    %v1391 = vunpack.c.l.b16 %v1375
    %v1392 = vunpack.c.l.b16 %v1376
    %v1393 = vunpack.c.l.b16 %v1377
    %v1394 = vunpack.c.l.b16 %v1378
    %v1395 = vunpack.c.l.b16 %v1379
    %v1396 = vunpack.c.l.b16 %v1380
    %v1397 = vunpack.c.l.b16 %v1381
    %v1398 = vunpack.c.l.b16 %v1382
    %v1399 = vpack.c.b16 %v1392, %v1391
    %v1400 = vpack.c.b16 %v1394, %v1393
    %v1401 = vpack.c.b16 %v1396, %v1395
    %v1402 = vpack.c.b16 %v1398, %v1397
    %v1408 = vsel %vm245, %v1374, 0
    %1410 = vmatprep.subr.bf16.mxu0 0
    %1411 = vmatpush1.bf16.msra.mxu0 0
    %1412 = vmatprep.subr.bf16.mxu0 0
    %1413 = vmatpush1.bf16.msra.mxu0 0
    %1414 = vmatprep.subr.bf16.mxu0 0
    %1415 = vmatpush1.bf16.msra.mxu0 0
    %1416 = vmatprep.subr.bf16.mxu0 0
    %1417 = vmatpush1.bf16.msra.mxu0 0
    %1418 = vmatprep.subr.bf16.mxu0 0
    %1419 = vmatpush1.bf16.msra.mxu0 %v1402
    %1420 = vmatprep.subr.bf16.mxu0 0
    %1421 = vmatpush1.bf16.msra.mxu0 %v1401
    %1422 = vmatprep.subr.bf16.mxu0 0
    %1423 = vmatpush1.bf16.msra.mxu0 %v1400
    %1424 = vmatprep.subr.bf16.mxu0 0
    %1425 = vmatpush1.bf16.msra.mxu0 %v1399
    %1426 = vmatprep.subr.bf16.mxu0 0
    %1427 = vmatpush2.bf16.msra.mxu0 0
    %1428 = vmatprep.subr.bf16.mxu0 0
    %1429 = vmatpush2.bf16.msra.mxu0 0
    %1430 = vmatprep.subr.bf16.mxu0 0
    %1431 = vmatpush2.bf16.msra.mxu0 0
    %1432 = vmatprep.subr.bf16.mxu0 0
    %1433 = vmatpush2.bf16.msra.mxu0 0
    %1434 = vmatprep.subr.bf16.mxu0 0
    %1435 = vmatpush2.bf16.msra.mxu0 0
    %1436 = vmatprep.subr.bf16.mxu0 0
    %1437 = vmatpush2.bf16.msra.mxu0 0
    %1438 = vmatprep.subr.bf16.mxu0 0
    %1439 = vmatpush2.bf16.msra.mxu0 0
    %1440 = vmatprep.subr.bf16.mxu0 0
    %1441 = vmatpush2.bf16.msra.mxu0 0
    %1442 = vmatprep.mubr.bf16.mxu0 0
    %1443 = vmatmul.mubr.bf16.gmra.mxu0 %v1408
    %v1444 = vpop.f32.mrf.mxu0
    %v1445 = vadd.f32 0.0, %v1444
    %v1446 = vpop.f32.mrf.mxu0
    %v1447 = vpop.f32.mrf.mxu0
    %v1448 = vpop.f32.mrf.mxu0
    %1449 = vdwg.mxu0
    %v1450 = vtanh.pop %v1445
    %v1451 = vpack.c.bf16 %v1450, %v1450
    %v1452 = vld [vmem:[%s8] sm:$0xf]
    %v1453 = vld [vmem:[%s8 + $0x4] sm:$0xf]
    %v1454 = vld [vmem:[%s8 + $0x8] sm:$0xf]
    %v1455 = vld [vmem:[%s8 + $0xc] sm:$0xf]
    %v1456 = vld [vmem:[%s9] sm:$0x1]
    %v1458 = vlaneseq
    %v1459 = vshrl.u32 %v1458, 7
    %v1460 = vsub.s32 0, %v1459
    %v1461 = vrot.slane %v1456, %v1460
    %v1467 = vunpack.c.l.b16 %v1452
    %v1468 = vunpack.c.l.b16 %v1453
    %v1469 = vunpack.c.l.b16 %v1454
    %v1470 = vunpack.c.l.b16 %v1455
    %v1471 = vpack.c.b16 %v1468, %v1467
    %v1472 = vpack.c.b16 %v1470, %v1469
    %v1476 = vsel %vm185, %v1451, 0
    %1478 = vmatprep.subr.bf16.mxu0 0
    %1479 = vmatpush1.bf16.msra.mxu0 0
    %1480 = vmatprep.subr.bf16.mxu0 0
    %1481 = vmatpush1.bf16.msra.mxu0 0
    %1482 = vmatprep.subr.bf16.mxu0 0
    %1483 = vmatpush1.bf16.msra.mxu0 0
    %1484 = vmatprep.subr.bf16.mxu0 0
    %1485 = vmatpush1.bf16.msra.mxu0 0
    %1486 = vmatprep.subr.bf16.mxu0 0
    %1487 = vmatpush1.bf16.msra.mxu0 0
    %1488 = vmatprep.subr.bf16.mxu0 0
    %1489 = vmatpush1.bf16.msra.mxu0 0
    %1490 = vmatprep.subr.bf16.mxu0 0
    %1491 = vmatpush1.bf16.msra.mxu0 %v1472
    %1492 = vmatprep.subr.bf16.mxu0 0
    %1493 = vmatpush1.bf16.msra.mxu0 %v1471
    %1494 = vmatprep.subr.bf16.mxu0 0
    %1495 = vmatpush2.bf16.msra.mxu0 0
    %1496 = vmatprep.subr.bf16.mxu0 0
    %1497 = vmatpush2.bf16.msra.mxu0 0
    %1498 = vmatprep.subr.bf16.mxu0 0
    %1499 = vmatpush2.bf16.msra.mxu0 0
    %1500 = vmatprep.subr.bf16.mxu0 0
    %1501 = vmatpush2.bf16.msra.mxu0 0
    %1502 = vmatprep.subr.bf16.mxu0 0
    %1503 = vmatpush2.bf16.msra.mxu0 0
    %1504 = vmatprep.subr.bf16.mxu0 0
    %1505 = vmatpush2.bf16.msra.mxu0 0
    %1506 = vmatprep.subr.bf16.mxu0 0
    %1507 = vmatpush2.bf16.msra.mxu0 0
    %1508 = vmatprep.subr.bf16.mxu0 0
    %1509 = vmatpush2.bf16.msra.mxu0 0
    %1510 = vmatprep.mubr.bf16.mxu0 0
    %1511 = vmatmul.mubr.bf16.gmra.mxu0 %v1476
    %v1512 = vpop.f32.mrf.mxu0
    %v1513 = vadd.f32 %v1461, %v1512
    %v1514 = vpop.f32.mrf.mxu0
    %v1515 = vpop.f32.mrf.mxu0
    %v1516 = vpop.f32.mrf.mxu0
    %1517 = vdwg.mxu0
    %vm1518 = vcmask 25600
    %1519 = vst.msk [vmem:[#allocation5] sm:$0x3] %vm1518, %v1513
    // Predicated region
    $region46: #{ae_lstm_forward.1} parent=1 // pred_check
      _
    $region47: #{ae_lstm_forward.1} parent=1 // pred_check_branch
      %1521 = sbr.rel (0) target = $region49
    $region48: #{ae_lstm_forward.1} parent=1 // pred_region
      %s1523 = ssub.s32 32, 32
      %1524 = vsyncadd [#allocation3], %s1523
      %s1526 = sshll.u32 [#allocation5], 4
      %s1527 = int_to_ptr.vmem [resolvable:$true] %s1526
      %1529 = dma.vmem_to_hbm [thread:$0]  %s1527, 32, %s10, [#allocation3]
    $region49: #{ae_lstm_forward.1} parent=1 // pred_fallthru
      _
    // Predicated region
    $region50: #{ae_lstm_forward.1} parent=1 // pred_check
      _
    $region51: #{ae_lstm_forward.1} parent=1 // pred_check_branch
      %1531 = sbr.rel (0) target = $region53
    $region52: #{ae_lstm_forward.1} parent=1 // pred_region
      %1532 = dma.done [#allocation3], 32
    $region53: #{ae_lstm_forward.1} parent=1 // pred_fallthru
      _
    %1533 = vsyncpa [#allocation3], 1
    %1534 = vsyncpa [#allocation4], 1

</llo_original>
